<compile_context>
chip_gen: v7x
topology: tpu7x:2x2x1
jax: 0.10.0
libtpu: 0.0.40
codegen_flags: <defaults>
</compile_context>

<pallas_src>
import functools

import jax
import jax.numpy as jnp
from jax.experimental import pallas as pl
from jax.experimental.pallas import tpu as pltpu


def _round_up(n, m):
    return ((n + m - 1) // m) * m


def _mha_kernel(x_ref, wqkv_ref, bqkv_ref, wo_ref, bo_ref, out_ref, attn_ref,
                *, num_heads, head_dim, batch_tile, seq_len, group_stride):
    """One grid step == one batch tile (BT batch elements).

    x_ref    : (BT*S, E)      flattened (batch, seq) rows
    wqkv_ref : (E, 3*Ep)      fused Q|K|V weights; each group padded to Ep
                              (128-aligned); softmax scale folded into Q
    bqkv_ref : (1, 3*Ep)
    wo_ref   : (E, E)         output projection (in x out)
    bo_ref   : (1, E)
    out_ref  : (BT*S, E)
    attn_ref : (BT, S, H*S)   lane-dense attention probabilities (heads along lanes)
    """
    H, Dh, BT, S, Ep = num_heads, head_dim, batch_tile, seq_len, group_stride
    E = H * Dh
    M = BT * S

    x = x_ref[...]

    # Single fused QKV projection on the MXU (scale already folded into Q cols).
    qkv = (jnp.dot(x, wqkv_ref[...], preferred_element_type=jnp.float32)
           + bqkv_ref[...])

    probs = []
    head_out = []
    for h in range(H):                       # static; only tiny per-head math here
        q0 = 0 * Ep + h * Dh
        k0 = 1 * Ep + h * Dh
        v0 = 2 * Ep + h * Dh
        qh = qkv[:, q0:q0 + Dh].reshape(BT, S, Dh)   # leading-dim split: free
        kh = qkv[:, k0:k0 + Dh].reshape(BT, S, Dh)
        vh = qkv[:, v0:v0 + Dh].reshape(BT, S, Dh)

        # Batched (single batch dim) contraction; no explicit transpose.
        s = jnp.einsum("bqd,bkd->bqk", qh, kh,
                       preferred_element_type=jnp.float32)       # (BT, S, S)

        # Numerically stable softmax over the last axis.
        m = jnp.max(s, axis=-1, keepdims=True)
        e = jnp.exp(s - m)
        denom = jnp.sum(e, axis=-1, keepdims=True)
        # EUP approximate reciprocal + one Newton step (~f32 accuracy, the
        # divide moves off the VALU slots).
        r = pl.reciprocal(denom, approx=True)
        r = r * (2.0 - denom * r)
        p = e * r

        probs.append(p)
        # TODO(synk): attention-prob dropout is identity (eval mode only).
        head_out.append(jnp.einsum("bqk,bkd->bqd", p, vh,
                                   preferred_element_type=jnp.float32))

    # Lane-dense attention writeback: heads concatenated along lanes, one store.
    attn_ref[...] = jnp.concatenate(probs, axis=-1).astype(attn_ref.dtype)

    # Gather all head outputs into (M, E) and do ONE output-projection matmul.
    heads = jnp.concatenate(head_out, axis=-1).reshape(M, E)
    out = (jnp.dot(heads, wo_ref[...], preferred_element_type=jnp.float32)
           + bo_ref[...])
    out_ref[...] = out.astype(out_ref.dtype)


def _pick_batch_tile(B, S, E, H, itemsize_in, itemsize_attn, target_rows,
                     vmem_budget_bytes):
    """Choose the batch tile BT (number of batch elements per grid step)."""
    Ep = _round_up(E, 128)

    def footprint(bt):
        m = bt * S
        f = 0
        f += 2 * m * E * itemsize_in                 # x tile (double-buffered)
        f += 2 * m * E * 4                           # out tile (double-buffered)
        f += 2 * bt * S * H * S * itemsize_attn      # attn tile (double-buffered)
        f += m * 3 * Ep * 4                          # fused qkv intermediate
        f += 3 * m * E * 4                           # per-head temporaries (approx)
        f += 2 * (E * 3 * Ep + E * E + 4 * E) * itemsize_in   # weights
        return f

    divisors = [d for d in range(1, B + 1) if B % d == 0]
    # BlockSpec legality: BT*S must be a multiple of 8, or the block covers B*S.
    legal = [d for d in divisors if (d * S) % 8 == 0 or d == B] or [B]
    # Stay inside the VMEM budget (derived for v7x's 64 MiB physical VMEM).
    fits = [d for d in legal if footprint(d) <= vmem_budget_bytes] or [min(legal)]
    # Aim for the 512-1024-row HBM-roofline sweet spot.
    cap = max(1, target_rows // S)
    pool = [d for d in fits if d <= cap] or [min(fits)]
    # Prefer >= 2 grid steps so both v7x TensorCores get work.
    multi = [d for d in pool if B // d >= 2]
    return max(multi) if multi else max(pool)


def multi_head_attention(x, params, num_heads, *, target_rows=512,
                         compute_dtype=None, attn_dtype=jnp.float32):
    """x: (B, S, E).  params: PyTorch-style wq,bq,wk,bk,wv,bv,wo,bo.

    Weights are (out_features, in_features); the wrapper transposes, fuses
    Q/K/V (softmax scale folded into Q), pads each projection group to a
    128-lane boundary, and flattens x to (B*S, E) rows.

    compute_dtype: optional (e.g. jnp.bfloat16) dtype for x / weights fed to
                   the MXU; softmax + accumulation stay f32.
    attn_dtype:    dtype of the returned attention probabilities (f32 default;
                   bf16 halves the dominant HBM writeback stream).
    """
    B, S, E = x.shape
    H = num_heads
    Dh = E // H
    assert Dh * H == E, "embed_dim must be divisible by num_heads"

    in_dtype = compute_dtype if compute_dtype is not None else x.dtype
    scale = float(Dh) ** -0.5

    Ep = _round_up(E, 128)
    pad = Ep - E

    def col_pad(w):   # (E, E) -> (E, Ep); zero columns are inert
        return jnp.pad(w, ((0, 0), (0, pad))) if pad else w

    def vec_pad(b):   # (E,) -> (Ep,)
        return jnp.pad(b, (0, pad)) if pad else b

    # Fused, per-group 128-aligned Q|K|V projection; scale folded into Q.
    wqkv = jnp.concatenate([col_pad(params["wq"].T * scale),
                            col_pad(params["wk"].T),
                            col_pad(params["wv"].T)], axis=1).astype(in_dtype)
    bqkv = jnp.concatenate([vec_pad(params["bq"] * scale),
                            vec_pad(params["bk"]),
                            vec_pad(params["bv"])]).reshape(1, 3 * Ep).astype(jnp.float32)
    wo = params["wo"].T.astype(in_dtype)
    bo = params["bo"].reshape(1, E).astype(jnp.float32)

    vmem_budget = 40 * 1024 * 1024          # keep headroom inside v7x's 64 MiB
    BT = _pick_batch_tile(B, S, E, H,
                          jnp.dtype(in_dtype).itemsize,
                          jnp.dtype(attn_dtype).itemsize,
                          target_rows, vmem_budget)
    M = BT * S
    grid = (B // BT,)

    x2d = x.reshape(B * S, E).astype(in_dtype)

    kernel = functools.partial(_mha_kernel, num_heads=H, head_dim=Dh,
                               batch_tile=BT, seq_len=S, group_stride=Ep)

    out2d, attn_flat = pl.pallas_call(
        kernel,
        out_shape=(
            jax.ShapeDtypeStruct((B * S, E), x.dtype),
            jax.ShapeDtypeStruct((B, S, H * S), attn_dtype),
        ),
        grid_spec=pltpu.PrefetchScalarGridSpec(
            num_scalar_prefetch=0,
            grid=grid,
            in_specs=[
                pl.BlockSpec((M, E), lambda i: (i, 0)),         # x rows (tiled)
                pl.BlockSpec((E, 3 * Ep), lambda i: (0, 0)),    # wqkv (grid-invariant)
                pl.BlockSpec((1, 3 * Ep), lambda i: (0, 0)),    # bqkv
                pl.BlockSpec((E, E), lambda i: (0, 0)),         # wo
                pl.BlockSpec((1, E), lambda i: (0, 0)),         # bo
            ],
            out_specs=[
                pl.BlockSpec((M, E), lambda i: (i, 0)),             # out rows
                pl.BlockSpec((BT, S, H * S), lambda i: (i, 0, 0)),  # lane-dense attn
            ],
        ),
        compiler_params=pltpu.CompilerParams(
            dimension_semantics=("parallel",),
            vmem_limit_bytes=48 * 1024 * 1024,
        ),
    )(x2d, wqkv, bqkv, wo, bo)

    out = out2d.reshape(B, S, E)
    # Wrapper-side layout plumbing back to the PyTorch (B, H, S, S) convention.
    attn = attn_flat.astype(jnp.float32).reshape(B, S, H, S).transpose(0, 2, 1, 3)
    return out, attn


def _reference(x, params, num_heads):
    """Pure-JAX reference replicating the PyTorch forward (eval-mode dropout)."""
    B, S, E = x.shape
    Dh = E // num_heads
    q = x @ params["wq"].T + params["bq"]
    k = x @ params["wk"].T + params["bk"]
    v = x @ params["wv"].T + params["bv"]
    q = q.reshape(B, S, num_heads, Dh).transpose(0, 2, 1, 3)
    k = k.reshape(B, S, num_heads, Dh).transpose(0, 2, 1, 3)
    v = v.reshape(B, S, num_heads, Dh).transpose(0, 2, 1, 3)
    attn = jnp.einsum("bhqd,bhkd->bhqk", q, k) * (Dh ** -0.5)
    attn = jax.nn.softmax(attn, axis=-1)
    out = jnp.einsum("bhqk,bhkd->bhqd", attn, v)
    out = out.transpose(0, 2, 1, 3).reshape(B, S, E)
    out = out @ params["wo"].T + params["bo"]
    return out, attn


if __name__ == "__main__":
    # Small shapes consistent with the module: batch=2, seq=8, embed=32, heads=4.
    B, S, E, H = 2, 8, 32, 4

    key = jax.random.PRNGKey(0)
    keys = jax.random.split(key, 9)

    x = jax.random.normal(keys[0], (B, S, E), dtype=jnp.float32)

    bound = 1.0 / (E ** 0.5)  # PyTorch Linear default-style uniform init
    params = {
        "wq": jax.random.uniform(keys[1], (E, E), jnp.float32, -bound, bound),
        "bq": jax.random.uniform(keys[2], (E,), jnp.float32, -bound, bound),
        "wk": jax.random.uniform(keys[3], (E, E), jnp.float32, -bound, bound),
        "bk": jax.random.uniform(keys[4], (E,), jnp.float32, -bound, bound),
        "wv": jax.random.uniform(keys[5], (E, E), jnp.float32, -bound, bound),
        "bv": jax.random.uniform(keys[6], (E,), jnp.float32, -bound, bound),
        "wo": jax.random.uniform(keys[7], (E, E), jnp.float32, -bound, bound),
        "bo": jax.random.uniform(keys[8], (E,), jnp.float32, -bound, bound),
    }

    out, attn = multi_head_attention(x, params, num_heads=H)
    out = jax.block_until_ready(out)
    attn = jax.block_until_ready(attn)

    ref_out, ref_attn = _reference(x, params, num_heads=H)
    assert out.shape == (B, S, E)
    assert attn.shape == (B, H, S, S)
    # Tolerance accounts for the Newton-refined approximate reciprocal in the
    # softmax (error well below 1e-4 in practice).
    assert jnp.allclose(out, ref_out, atol=1e-3, rtol=1e-3)
    assert jnp.allclose(attn, ref_attn, atol=1e-3, rtol=1e-3)

    print("KERNEL_OK")
</pallas_src>

<mosaic_0001>
module attributes {stable_mosaic.version = 11 : i64} {
  func.func @_mha_kernel(%arg0: i32, %arg1: memref<8x32xf32, #tpu.memory_space<vmem>>, %arg2: memref<32x384xf32, #tpu.memory_space<vmem>>, %arg3: memref<1x384xf32, #tpu.memory_space<vmem>>, %arg4: memref<32x32xf32, #tpu.memory_space<vmem>>, %arg5: memref<1x32xf32, #tpu.memory_space<vmem>>, %arg6: memref<8x32xf32, #tpu.memory_space<vmem>>, %arg7: memref<1x8x32xf32, #tpu.memory_space<vmem>>) attributes {dimension_semantics = [#tpu.dimension_semantics<parallel>], iteration_bounds = array<i64: 2>, scalar_prefetch = 0 : i64, scratch_operands = 0 : i64, tpu.core_type = #tpu.core_type<tc>, window_params = [{transform_indices = @transform_0, window_bounds = array<i64: 8, 32>}, {pipeline_mode = #tpu.pipeline_mode<synchronous>, transform_indices = @transform_1, window_bounds = array<i64: 32, 384>}, {pipeline_mode = #tpu.pipeline_mode<synchronous>, transform_indices = @transform_2, window_bounds = array<i64: 1, 384>}, {pipeline_mode = #tpu.pipeline_mode<synchronous>, transform_indices = @transform_3, window_bounds = array<i64: 32, 32>}, {pipeline_mode = #tpu.pipeline_mode<synchronous>, transform_indices = @transform_4, window_bounds = array<i64: 1, 32>}, {transform_indices = @transform_5, window_bounds = array<i64: 8, 32>}, {transform_indices = @transform_6, window_bounds = array<i64: 1, 8, 32>}]} {
    %c0 = arith.constant 0 : index
    %c0_0 = arith.constant 0 : index
    %0 = vector.load %arg1[%c0, %c0_0] : memref<8x32xf32, #tpu.memory_space<vmem>>, vector<8x32xf32>
    %c0_1 = arith.constant 0 : index
    %c0_2 = arith.constant 0 : index
    %1 = vector.load %arg2[%c0_1, %c0_2] : memref<32x384xf32, #tpu.memory_space<vmem>>, vector<32x384xf32>
    %cst = arith.constant dense<0.000000e+00> : vector<8x384xf32>
    %2 = tpu.matmul %0, %1, %cst {dimension_numbers = #tpu.dot_dimension_numbers<[1], [0], [0], [1], [0, 0, 1, 1], [], []>} : vector<8x32xf32>, vector<32x384xf32>, vector<8x384xf32> -> vector<8x384xf32>
    %c0_3 = arith.constant 0 : index
    %c0_4 = arith.constant 0 : index
    %3 = vector.load %arg3[%c0_3, %c0_4] : memref<1x384xf32, #tpu.memory_space<vmem>>, vector<1x384xf32>
    %4 = vector.broadcast %3 : vector<1x384xf32> to vector<8x384xf32>
    %5 = arith.addf %2, %4 : vector<8x384xf32>
    %6 = vector.extract_strided_slice %5 {offsets = [0, 0], sizes = [8, 8], strides = [1, 1]} : vector<8x384xf32> to vector<8x8xf32>
    %7 = vector.shape_cast %6 : vector<8x8xf32> to vector<1x8x8xf32>
    %8 = vector.extract_strided_slice %5 {offsets = [0, 128], sizes = [8, 8], strides = [1, 1]} : vector<8x384xf32> to vector<8x8xf32>
    %9 = vector.shape_cast %8 : vector<8x8xf32> to vector<1x8x8xf32>
    %10 = vector.extract_strided_slice %5 {offsets = [0, 256], sizes = [8, 8], strides = [1, 1]} : vector<8x384xf32> to vector<8x8xf32>
    %11 = vector.shape_cast %10 : vector<8x8xf32> to vector<1x8x8xf32>
    "tpu.trace_start"() <{level = 10 : i32, message = "bqd,bkd->bqk"}> : () -> ()
    %cst_5 = arith.constant dense<0.000000e+00> : vector<1x8x8xf32>
    %12 = tpu.matmul %7, %9, %cst_5 {dimension_numbers = #tpu.dot_dimension_numbers<[2], [2], [1], [1], [0, 0, 0, 1, 1, 1], [0], [0]>} : vector<1x8x8xf32>, vector<1x8x8xf32>, vector<1x8x8xf32> -> vector<1x8x8xf32>
    "tpu.trace_stop"() : () -> ()
    %cst_6 = arith.constant dense<0xFF800000> : vector<1x8xf32>
    %13 = vector.multi_reduction <maximumf>, %12, %cst_6 [2] : vector<1x8x8xf32> to vector<1x8xf32>
    %14 = vector.shape_cast %13 : vector<1x8xf32> to vector<1x8x1xf32>
    %15 = vector.broadcast %14 : vector<1x8x1xf32> to vector<1x8x8xf32>
    %16 = arith.subf %12, %15 : vector<1x8x8xf32>
    %17 = math.exp %16 : vector<1x8x8xf32>
    %cst_7 = arith.constant dense<0.000000e+00> : vector<1x8xf32>
    %18 = vector.multi_reduction <add>, %17, %cst_7 [2] : vector<1x8x8xf32> to vector<1x8xf32>
    %19 = vector.shape_cast %18 : vector<1x8xf32> to vector<1x8x1xf32>
    %20 = tpu.reciprocal %19 {approx = true} : vector<1x8x1xf32> -> vector<1x8x1xf32>
    %21 = arith.mulf %19, %20 : vector<1x8x1xf32>
    %cst_8 = arith.constant 2.000000e+00 : f32
    %22 = vector.broadcast %cst_8 : f32 to vector<1x8x1xf32>
    %23 = arith.subf %22, %21 : vector<1x8x1xf32>
    %24 = arith.mulf %20, %23 : vector<1x8x1xf32>
    %25 = vector.broadcast %24 : vector<1x8x1xf32> to vector<1x8x8xf32>
    %26 = arith.mulf %17, %25 : vector<1x8x8xf32>
    "tpu.trace_start"() <{level = 10 : i32, message = "bqk,bkd->bqd"}> : () -> ()
    %cst_9 = arith.constant dense<0.000000e+00> : vector<1x8x8xf32>
    %27 = tpu.matmul %26, %11, %cst_9 {dimension_numbers = #tpu.dot_dimension_numbers<[2], [1], [1], [2], [0, 0, 0, 1, 1, 2], [0], [0]>} : vector<1x8x8xf32>, vector<1x8x8xf32>, vector<1x8x8xf32> -> vector<1x8x8xf32>
    "tpu.trace_stop"() : () -> ()
    %28 = vector.extract_strided_slice %5 {offsets = [0, 8], sizes = [8, 8], strides = [1, 1]} : vector<8x384xf32> to vector<8x8xf32>
    %29 = vector.shape_cast %28 : vector<8x8xf32> to vector<1x8x8xf32>
    %30 = vector.extract_strided_slice %5 {offsets = [0, 136], sizes = [8, 8], strides = [1, 1]} : vector<8x384xf32> to vector<8x8xf32>
    %31 = vector.shape_cast %30 : vector<8x8xf32> to vector<1x8x8xf32>
    %32 = vector.extract_strided_slice %5 {offsets = [0, 264], sizes = [8, 8], strides = [1, 1]} : vector<8x384xf32> to vector<8x8xf32>
    %33 = vector.shape_cast %32 : vector<8x8xf32> to vector<1x8x8xf32>
    "tpu.trace_start"() <{level = 10 : i32, message = "bqd,bkd->bqk"}> : () -> ()
    %cst_10 = arith.constant dense<0.000000e+00> : vector<1x8x8xf32>
    %34 = tpu.matmul %29, %31, %cst_10 {dimension_numbers = #tpu.dot_dimension_numbers<[2], [2], [1], [1], [0, 0, 0, 1, 1, 1], [0], [0]>} : vector<1x8x8xf32>, vector<1x8x8xf32>, vector<1x8x8xf32> -> vector<1x8x8xf32>
    "tpu.trace_stop"() : () -> ()
    %cst_11 = arith.constant dense<0xFF800000> : vector<1x8xf32>
    %35 = vector.multi_reduction <maximumf>, %34, %cst_11 [2] : vector<1x8x8xf32> to vector<1x8xf32>
    %36 = vector.shape_cast %35 : vector<1x8xf32> to vector<1x8x1xf32>
    %37 = vector.broadcast %36 : vector<1x8x1xf32> to vector<1x8x8xf32>
    %38 = arith.subf %34, %37 : vector<1x8x8xf32>
    %39 = math.exp %38 : vector<1x8x8xf32>
    %cst_12 = arith.constant dense<0.000000e+00> : vector<1x8xf32>
    %40 = vector.multi_reduction <add>, %39, %cst_12 [2] : vector<1x8x8xf32> to vector<1x8xf32>
    %41 = vector.shape_cast %40 : vector<1x8xf32> to vector<1x8x1xf32>
    %42 = tpu.reciprocal %41 {approx = true} : vector<1x8x1xf32> -> vector<1x8x1xf32>
    %43 = arith.mulf %41, %42 : vector<1x8x1xf32>
    %cst_13 = arith.constant 2.000000e+00 : f32
    %44 = vector.broadcast %cst_13 : f32 to vector<1x8x1xf32>
    %45 = arith.subf %44, %43 : vector<1x8x1xf32>
    %46 = arith.mulf %42, %45 : vector<1x8x1xf32>
    %47 = vector.broadcast %46 : vector<1x8x1xf32> to vector<1x8x8xf32>
    %48 = arith.mulf %39, %47 : vector<1x8x8xf32>
    "tpu.trace_start"() <{level = 10 : i32, message = "bqk,bkd->bqd"}> : () -> ()
    %cst_14 = arith.constant dense<0.000000e+00> : vector<1x8x8xf32>
    %49 = tpu.matmul %48, %33, %cst_14 {dimension_numbers = #tpu.dot_dimension_numbers<[2], [1], [1], [2], [0, 0, 0, 1, 1, 2], [0], [0]>} : vector<1x8x8xf32>, vector<1x8x8xf32>, vector<1x8x8xf32> -> vector<1x8x8xf32>
    "tpu.trace_stop"() : () -> ()
    %50 = vector.extract_strided_slice %5 {offsets = [0, 16], sizes = [8, 8], strides = [1, 1]} : vector<8x384xf32> to vector<8x8xf32>
    %51 = vector.shape_cast %50 : vector<8x8xf32> to vector<1x8x8xf32>
    %52 = vector.extract_strided_slice %5 {offsets = [0, 144], sizes = [8, 8], strides = [1, 1]} : vector<8x384xf32> to vector<8x8xf32>
    %53 = vector.shape_cast %52 : vector<8x8xf32> to vector<1x8x8xf32>
    %54 = vector.extract_strided_slice %5 {offsets = [0, 272], sizes = [8, 8], strides = [1, 1]} : vector<8x384xf32> to vector<8x8xf32>
    %55 = vector.shape_cast %54 : vector<8x8xf32> to vector<1x8x8xf32>
    "tpu.trace_start"() <{level = 10 : i32, message = "bqd,bkd->bqk"}> : () -> ()
    %cst_15 = arith.constant dense<0.000000e+00> : vector<1x8x8xf32>
    %56 = tpu.matmul %51, %53, %cst_15 {dimension_numbers = #tpu.dot_dimension_numbers<[2], [2], [1], [1], [0, 0, 0, 1, 1, 1], [0], [0]>} : vector<1x8x8xf32>, vector<1x8x8xf32>, vector<1x8x8xf32> -> vector<1x8x8xf32>
    "tpu.trace_stop"() : () -> ()
    %cst_16 = arith.constant dense<0xFF800000> : vector<1x8xf32>
    %57 = vector.multi_reduction <maximumf>, %56, %cst_16 [2] : vector<1x8x8xf32> to vector<1x8xf32>
    %58 = vector.shape_cast %57 : vector<1x8xf32> to vector<1x8x1xf32>
    %59 = vector.broadcast %58 : vector<1x8x1xf32> to vector<1x8x8xf32>
    %60 = arith.subf %56, %59 : vector<1x8x8xf32>
    %61 = math.exp %60 : vector<1x8x8xf32>
    %cst_17 = arith.constant dense<0.000000e+00> : vector<1x8xf32>
    %62 = vector.multi_reduction <add>, %61, %cst_17 [2] : vector<1x8x8xf32> to vector<1x8xf32>
    %63 = vector.shape_cast %62 : vector<1x8xf32> to vector<1x8x1xf32>
    %64 = tpu.reciprocal %63 {approx = true} : vector<1x8x1xf32> -> vector<1x8x1xf32>
    %65 = arith.mulf %63, %64 : vector<1x8x1xf32>
    %cst_18 = arith.constant 2.000000e+00 : f32
    %66 = vector.broadcast %cst_18 : f32 to vector<1x8x1xf32>
    %67 = arith.subf %66, %65 : vector<1x8x1xf32>
    %68 = arith.mulf %64, %67 : vector<1x8x1xf32>
    %69 = vector.broadcast %68 : vector<1x8x1xf32> to vector<1x8x8xf32>
    %70 = arith.mulf %61, %69 : vector<1x8x8xf32>
    "tpu.trace_start"() <{level = 10 : i32, message = "bqk,bkd->bqd"}> : () -> ()
    %cst_19 = arith.constant dense<0.000000e+00> : vector<1x8x8xf32>
    %71 = tpu.matmul %70, %55, %cst_19 {dimension_numbers = #tpu.dot_dimension_numbers<[2], [1], [1], [2], [0, 0, 0, 1, 1, 2], [0], [0]>} : vector<1x8x8xf32>, vector<1x8x8xf32>, vector<1x8x8xf32> -> vector<1x8x8xf32>
    "tpu.trace_stop"() : () -> ()
    %72 = vector.extract_strided_slice %5 {offsets = [0, 24], sizes = [8, 8], strides = [1, 1]} : vector<8x384xf32> to vector<8x8xf32>
    %73 = vector.shape_cast %72 : vector<8x8xf32> to vector<1x8x8xf32>
    %74 = vector.extract_strided_slice %5 {offsets = [0, 152], sizes = [8, 8], strides = [1, 1]} : vector<8x384xf32> to vector<8x8xf32>
    %75 = vector.shape_cast %74 : vector<8x8xf32> to vector<1x8x8xf32>
    %76 = vector.extract_strided_slice %5 {offsets = [0, 280], sizes = [8, 8], strides = [1, 1]} : vector<8x384xf32> to vector<8x8xf32>
    %77 = vector.shape_cast %76 : vector<8x8xf32> to vector<1x8x8xf32>
    "tpu.trace_start"() <{level = 10 : i32, message = "bqd,bkd->bqk"}> : () -> ()
    %cst_20 = arith.constant dense<0.000000e+00> : vector<1x8x8xf32>
    %78 = tpu.matmul %73, %75, %cst_20 {dimension_numbers = #tpu.dot_dimension_numbers<[2], [2], [1], [1], [0, 0, 0, 1, 1, 1], [0], [0]>} : vector<1x8x8xf32>, vector<1x8x8xf32>, vector<1x8x8xf32> -> vector<1x8x8xf32>
    "tpu.trace_stop"() : () -> ()
    %cst_21 = arith.constant dense<0xFF800000> : vector<1x8xf32>
    %79 = vector.multi_reduction <maximumf>, %78, %cst_21 [2] : vector<1x8x8xf32> to vector<1x8xf32>
    %80 = vector.shape_cast %79 : vector<1x8xf32> to vector<1x8x1xf32>
    %81 = vector.broadcast %80 : vector<1x8x1xf32> to vector<1x8x8xf32>
    %82 = arith.subf %78, %81 : vector<1x8x8xf32>
    %83 = math.exp %82 : vector<1x8x8xf32>
    %cst_22 = arith.constant dense<0.000000e+00> : vector<1x8xf32>
    %84 = vector.multi_reduction <add>, %83, %cst_22 [2] : vector<1x8x8xf32> to vector<1x8xf32>
    %85 = vector.shape_cast %84 : vector<1x8xf32> to vector<1x8x1xf32>
    %86 = tpu.reciprocal %85 {approx = true} : vector<1x8x1xf32> -> vector<1x8x1xf32>
    %87 = arith.mulf %85, %86 : vector<1x8x1xf32>
    %cst_23 = arith.constant 2.000000e+00 : f32
    %88 = vector.broadcast %cst_23 : f32 to vector<1x8x1xf32>
    %89 = arith.subf %88, %87 : vector<1x8x1xf32>
    %90 = arith.mulf %86, %89 : vector<1x8x1xf32>
    %91 = vector.broadcast %90 : vector<1x8x1xf32> to vector<1x8x8xf32>
    %92 = arith.mulf %83, %91 : vector<1x8x8xf32>
    "tpu.trace_start"() <{level = 10 : i32, message = "bqk,bkd->bqd"}> : () -> ()
    %cst_24 = arith.constant dense<0.000000e+00> : vector<1x8x8xf32>
    %93 = tpu.matmul %92, %77, %cst_24 {dimension_numbers = #tpu.dot_dimension_numbers<[2], [1], [1], [2], [0, 0, 0, 1, 1, 2], [0], [0]>} : vector<1x8x8xf32>, vector<1x8x8xf32>, vector<1x8x8xf32> -> vector<1x8x8xf32>
    "tpu.trace_stop"() : () -> ()
    %94 = tpu.concatenate %26, %48, %70, %92 in 2 : vector<1x8x8xf32>, vector<1x8x8xf32>, vector<1x8x8xf32>, vector<1x8x8xf32> -> vector<1x8x32xf32>
    %c0_25 = arith.constant 0 : index
    %c0_26 = arith.constant 0 : index
    %c0_27 = arith.constant 0 : index
    %95 = vector.load %arg7[%c0_25, %c0_26, %c0_27] : memref<1x8x32xf32, #tpu.memory_space<vmem>>, vector<1x8x32xf32>
    tpu.vector_store %arg7[%c0_25, %c0_26, %c0_27], %94 {strides = array<i32>} : memref<1x8x32xf32, #tpu.memory_space<vmem>>, vector<1x8x32xf32>,
    %96 = tpu.concatenate %27, %49, %71, %93 in 2 : vector<1x8x8xf32>, vector<1x8x8xf32>, vector<1x8x8xf32>, vector<1x8x8xf32> -> vector<1x8x32xf32>
    %97 = vector.shape_cast %96 : vector<1x8x32xf32> to vector<8x32xf32>
    %c0_28 = arith.constant 0 : index
    %c0_29 = arith.constant 0 : index
    %98 = vector.load %arg4[%c0_28, %c0_29] : memref<32x32xf32, #tpu.memory_space<vmem>>, vector<32x32xf32>
    %cst_30 = arith.constant dense<0.000000e+00> : vector<8x32xf32>
    %99 = tpu.matmul %97, %98, %cst_30 {dimension_numbers = #tpu.dot_dimension_numbers<[1], [0], [0], [1], [0, 0, 1, 1], [], []>} : vector<8x32xf32>, vector<32x32xf32>, vector<8x32xf32> -> vector<8x32xf32>
    %c0_31 = arith.constant 0 : index
    %c0_32 = arith.constant 0 : index
    %100 = vector.load %arg5[%c0_31, %c0_32] : memref<1x32xf32, #tpu.memory_space<vmem>>, vector<1x32xf32>
    %101 = vector.broadcast %100 : vector<1x32xf32> to vector<8x32xf32>
    %102 = arith.addf %99, %101 : vector<8x32xf32>
    %c0_33 = arith.constant 0 : index
    %c0_34 = arith.constant 0 : index
    %103 = vector.load %arg6[%c0_33, %c0_34] : memref<8x32xf32, #tpu.memory_space<vmem>>, vector<8x32xf32>
    tpu.vector_store %arg6[%c0_33, %c0_34], %102 {strides = array<i32>} : memref<8x32xf32, #tpu.memory_space<vmem>>, vector<8x32xf32>,
    return
  }
  func.func @transform_0(%arg0: i32) -> (i32, i32) {
    %c0_i32 = arith.constant 0 : i32
    %c0_i32_0 = arith.constant 0 : i32
    return %arg0, %c0_i32 : i32, i32
  }
  func.func @transform_1(%arg0: i32) -> (i32, i32) {
    %c0_i32 = arith.constant 0 : i32
    %c0_i32_0 = arith.constant 0 : i32
    %c0_i32_1 = arith.constant 0 : i32
    return %c0_i32, %c0_i32_0 : i32, i32
  }
  func.func @transform_2(%arg0: i32) -> (i32, i32) {
    %c0_i32 = arith.constant 0 : i32
    %c0_i32_0 = arith.constant 0 : i32
    %c0_i32_1 = arith.constant 0 : i32
    return %c0_i32, %c0_i32_0 : i32, i32
  }
  func.func @transform_3(%arg0: i32) -> (i32, i32) {
    %c0_i32 = arith.constant 0 : i32
    %c0_i32_0 = arith.constant 0 : i32
    %c0_i32_1 = arith.constant 0 : i32
    return %c0_i32, %c0_i32_0 : i32, i32
  }
  func.func @transform_4(%arg0: i32) -> (i32, i32) {
    %c0_i32 = arith.constant 0 : i32
    %c0_i32_0 = arith.constant 0 : i32
    %c0_i32_1 = arith.constant 0 : i32
    return %c0_i32, %c0_i32_0 : i32, i32
  }
  func.func @transform_5(%arg0: i32) -> (i32, i32) {
    %c0_i32 = arith.constant 0 : i32
    %c0_i32_0 = arith.constant 0 : i32
    return %arg0, %c0_i32 : i32, i32
  }
  func.func @transform_6(%arg0: i32) -> (i32, i32, i32) {
    %c0_i32 = arith.constant 0 : i32
    %c0_i32_0 = arith.constant 0 : i32
    %c0_i32_1 = arith.constant 0 : i32
    return %arg0, %c0_i32, %c0_i32_0 : i32, i32, i32
  }
}

</mosaic_0001>

<llo_original>
// kernel: tpu_custom_call.1
$region0: #{tpu_custom_call.1}
  #allocation0 [shape = 'u32[]', space=smem, size = 0x4, offset = 0x4, fixed_abs, tag = 'smem constant byte address 0x4 - core index']
  #allocation1 [shape = 'u32[144,128]{1,0:T(1,128)}', space=vmem, size = 0x12000, scoped, tag = 'internal scratch']
  %s0 = inlined_call_operand.hbm [shape: f32[16,32], index: 0, kind: input, shape index: {}]
  %s1 = inlined_call_operand.hbm [shape: f32[32,384], index: 1, kind: input, shape index: {}]
  %s2 = inlined_call_operand.vmem [shape: f32[1,384], index: 2, kind: input, shape index: {}]
  %s3 = inlined_call_operand.hbm [shape: f32[32,32], index: 3, kind: input, shape index: {}]
  %s4 = inlined_call_operand.vmem [shape: f32[1,32], index: 4, kind: input, shape index: {}]
  %s5 = inlined_call_operand.hbm [shape: f32[16,32], index: 5, kind: output, shape index: {0}]
  %s6 = inlined_call_operand.hbm [shape: f32[2,8,32], index: 6, kind: output, shape index: {1}]
  %7 = xla_tuple %s5, %s6
  %s8 = sld [smem:[#allocation0]]
  $region73: #{tpu_custom_call.1} parent=0
    _
  %s10 = ssub.s32 1, %s8
  %s11 = scalar_select 0, %s10, %s8
  $region1: #{tpu_custom_call.1} parent=0
    #allocation2 [shape = 'u8[8192]{0}', space=vmem, size = 0x2000, scoped, tag = 'input window, operand 0']
    #allocation3 [shape = 's32[2]{0}', space=sflag, size = 0x8, scoped, tag = 'scoped memory for tpu_custom_call.1']
    #allocation4 [shape = 's32[2]{0}', space=sflag, size = 0x8, scoped, tag = 'scoped memory for tpu_custom_call.1']
    #allocation5 [shape = 'u8[49152]{0}', space=vmem, size = 0xc000, scoped, tag = 'input window, operand 1, single buffered']
    #allocation6 [shape = 's32[1]{0}', space=sflag, size = 0x4, scoped, tag = 'scoped memory for tpu_custom_call.1']
    #allocation7 [shape = 'u8[16384]{0}', space=vmem, size = 0x4000, scoped, tag = 'input window, operand 3, single buffered']
    #allocation8 [shape = 'u8[8192]{0}', space=vmem, size = 0x2000, scoped, tag = 'output window, operand 0']
    #allocation9 [shape = 'u8[8192]{0}', space=vmem, size = 0x2000, scoped, tag = 'output window, operand 1']
    #allocation10 [shape = 's32[2]{0}', space=sflag, size = 0x8, scoped, tag = 'scoped memory for tpu_custom_call.1']
    %12 = vsyncpa [#allocation3], 0
    %s13 = scalar_lea.sflag [#allocation3], 1
    %14 = vsyncpa %s13, 0
    %15 = vsyncpa [#allocation6], 0
    %16 = vsyncpa [#allocation4], 0
    %s17 = scalar_lea.sflag [#allocation4], 1
    %18 = vsyncpa %s17, 0
    %19 = vsyncpa [#allocation10], 0
    %s20 = scalar_lea.sflag [#allocation10], 1
    %21 = vsyncpa %s20, 0
    loop: start=0, step=1, limit=4
    $region2: #{tpu_custom_call.1} parent=1 // loop_pre_header
      _
    $region3: #{tpu_custom_call.1} parent=1 // loop_header
      %s23 = sphi 0, %s27
      %p24 = scmp.ge.s32.totalorder %s23, 4
      %s33 = sphi 0, %s35
      %s36 = sphi 0, %s33
      %s37 = sphi 0, %s36
      %s53 = sphi 0, %s37
      %s57 = sphi 0, %s57
      %s59 = sphi 0, %s57
      %s60 = sphi 0, %s59
      %s74 = sphi 0, %s60
      %s78 = sphi 0, %s78
      %s80 = sphi 0, %s78
      %s81 = sphi 0, %s80
      %s95 = sphi 0, %s81
      %s99 = sphi 0, %s99
      %s101 = sphi 0, %s99
      %s102 = sphi 0, %s101
      %s116 = sphi 0, %s102
      %s120 = sphi 0, %s120
      %s122 = sphi 0, %s120
      %s123 = sphi 0, %s122
      %s137 = sphi 0, %s123
      %s143 = sphi 0, %s145
      %s146 = sphi 0, %s143
      %s147 = sphi 0, %s146
      %s163 = sphi 0, %s147
      %s169 = sphi 0, %s171
      %s172 = sphi 0, %s169
      %s173 = sphi 0, %s172
      %s189 = sphi 0, %s173
    $region4: #{tpu_custom_call.1} parent=1 // loop_header_branch
      %26 = sbr.rel (%p24) target = $region8
    $region5: #{tpu_custom_call.1} parent=1 // loop_body
      %s28 = ssub.s32 %s23, 1
      %s29 = ssub.s32 %s23, 2
      %s30 = sadd.s32 %s23, 1
      %s31 = ssub.s32 %s23, %s30
      %p32 = scmp.eq.s32.totalorder %s31, 0
      %s34 = sadd.s32 %s33, 1
      %s35 = scalar_select %p32, %s33, %s34
      %p38 = pneg %p32
      %p39 = scmp.eq.s32.totalorder %s23, 1
      %p40 = por %p38, %p39
      %p41 = scmp.ne.s32.totalorder %s33, %s36
      %p42 = scmp.eq.s32.totalorder %s23, 0
      %p43 = por %p41, %p42
      %p44 = scmp.ne.s32.totalorder %s33, %s36
      %p45 = scmp.eq.s32.totalorder %s28, 1
      %p46 = por %p44, %p45
      %p47 = scmp.ne.s32.totalorder %s36, %s37
      %p48 = scmp.eq.s32.totalorder %s28, 0
      %p49 = por %p47, %p48
      %p50 = scmp.ne.s32.totalorder %s36, %s37
      %p51 = scmp.eq.s32.totalorder %s29, 1
      %p52 = por %p50, %p51
      %p54 = scmp.ne.s32.totalorder %s37, %s53
      %p55 = scmp.eq.s32.totalorder %s29, 0
      %p56 = por %p54, %p55
      %s58 = sadd.s32 %s57, 1
      %p61 = scmp.eq.s32.totalorder %s23, 1
      %p62 = scmp.ne.s32.totalorder %s57, %s59
      %p63 = scmp.eq.s32.totalorder %s23, 0
      %p64 = por %p62, %p63
      %p65 = scmp.ne.s32.totalorder %s57, %s59
      %p66 = scmp.eq.s32.totalorder %s28, 1
      %p67 = por %p65, %p66
      %p68 = scmp.ne.s32.totalorder %s59, %s60
      %p69 = scmp.eq.s32.totalorder %s28, 0
      %p70 = por %p68, %p69
      %p71 = scmp.ne.s32.totalorder %s59, %s60
      %p72 = scmp.eq.s32.totalorder %s29, 1
      %p73 = por %p71, %p72
      %p75 = scmp.ne.s32.totalorder %s60, %s74
      %p76 = scmp.eq.s32.totalorder %s29, 0
      %p77 = por %p75, %p76
      %s79 = sadd.s32 %s78, 1
      %p82 = scmp.eq.s32.totalorder %s23, 1
      %p83 = scmp.ne.s32.totalorder %s78, %s80
      %p84 = scmp.eq.s32.totalorder %s23, 0
      %p85 = por %p83, %p84
      %p86 = scmp.ne.s32.totalorder %s78, %s80
      %p87 = scmp.eq.s32.totalorder %s28, 1
      %p88 = por %p86, %p87
      %p89 = scmp.ne.s32.totalorder %s80, %s81
      %p90 = scmp.eq.s32.totalorder %s28, 0
      %p91 = por %p89, %p90
      %p92 = scmp.ne.s32.totalorder %s80, %s81
      %p93 = scmp.eq.s32.totalorder %s29, 1
      %p94 = por %p92, %p93
      %p96 = scmp.ne.s32.totalorder %s81, %s95
      %p97 = scmp.eq.s32.totalorder %s29, 0
      %p98 = por %p96, %p97
      %s100 = sadd.s32 %s99, 1
      %p103 = scmp.eq.s32.totalorder %s23, 1
      %p104 = scmp.ne.s32.totalorder %s99, %s101
      %p105 = scmp.eq.s32.totalorder %s23, 0
      %p106 = por %p104, %p105
      %p107 = scmp.ne.s32.totalorder %s99, %s101
      %p108 = scmp.eq.s32.totalorder %s28, 1
      %p109 = por %p107, %p108
      %p110 = scmp.ne.s32.totalorder %s101, %s102
      %p111 = scmp.eq.s32.totalorder %s28, 0
      %p112 = por %p110, %p111
      %p113 = scmp.ne.s32.totalorder %s101, %s102
      %p114 = scmp.eq.s32.totalorder %s29, 1
      %p115 = por %p113, %p114
      %p117 = scmp.ne.s32.totalorder %s102, %s116
      %p118 = scmp.eq.s32.totalorder %s29, 0
      %p119 = por %p117, %p118
      %s121 = sadd.s32 %s120, 1
      %p124 = scmp.eq.s32.totalorder %s23, 1
      %p125 = scmp.ne.s32.totalorder %s120, %s122
      %p126 = scmp.eq.s32.totalorder %s23, 0
      %p127 = por %p125, %p126
      %p128 = scmp.ne.s32.totalorder %s120, %s122
      %p129 = scmp.eq.s32.totalorder %s28, 1
      %p130 = por %p128, %p129
      %p131 = scmp.ne.s32.totalorder %s122, %s123
      %p132 = scmp.eq.s32.totalorder %s28, 0
      %p133 = por %p131, %p132
      %p134 = scmp.ne.s32.totalorder %s122, %s123
      %p135 = scmp.eq.s32.totalorder %s29, 1
      %p136 = por %p134, %p135
      %p138 = scmp.ne.s32.totalorder %s123, %s137
      %p139 = scmp.eq.s32.totalorder %s29, 0
      %p140 = por %p138, %p139
      %s141 = ssub.s32 %s23, %s30
      %p142 = scmp.eq.s32.totalorder %s141, 0
      %s144 = sadd.s32 %s143, 1
      %s145 = scalar_select %p142, %s143, %s144
      %p148 = pneg %p142
      %p149 = scmp.eq.s32.totalorder %s23, 1
      %p150 = por %p148, %p149
      %p151 = scmp.ne.s32.totalorder %s143, %s146
      %p152 = scmp.eq.s32.totalorder %s23, 0
      %p153 = por %p151, %p152
      %p154 = scmp.ne.s32.totalorder %s143, %s146
      %p155 = scmp.eq.s32.totalorder %s28, 1
      %p156 = por %p154, %p155
      %p157 = scmp.ne.s32.totalorder %s146, %s147
      %p158 = scmp.eq.s32.totalorder %s28, 0
      %p159 = por %p157, %p158
      %p160 = scmp.ne.s32.totalorder %s146, %s147
      %p161 = scmp.eq.s32.totalorder %s29, 1
      %p162 = por %p160, %p161
      %p164 = scmp.ne.s32.totalorder %s147, %s163
      %p165 = scmp.eq.s32.totalorder %s29, 0
      %p166 = por %p164, %p165
      %s167 = ssub.s32 %s23, %s30
      %p168 = scmp.eq.s32.totalorder %s167, 0
      %s170 = sadd.s32 %s169, 1
      %s171 = scalar_select %p168, %s169, %s170
      %p174 = pneg %p168
      %p175 = scmp.eq.s32.totalorder %s23, 1
      %p176 = por %p174, %p175
      %p177 = scmp.ne.s32.totalorder %s169, %s172
      %p178 = scmp.eq.s32.totalorder %s23, 0
      %p179 = por %p177, %p178
      %p180 = scmp.ne.s32.totalorder %s169, %s172
      %p181 = scmp.eq.s32.totalorder %s28, 1
      %p182 = por %p180, %p181
      %p183 = scmp.ne.s32.totalorder %s172, %s173
      %p184 = scmp.eq.s32.totalorder %s28, 0
      %p185 = por %p183, %p184
      %p186 = scmp.ne.s32.totalorder %s172, %s173
      %p187 = scmp.eq.s32.totalorder %s29, 1
      %p188 = por %p186, %p187
      %p190 = scmp.ne.s32.totalorder %s173, %s189
      %p191 = scmp.eq.s32.totalorder %s29, 0
      %p192 = por %p190, %p191
      %p193 = scmp.le.s32.totalorder 1, %s23
      %p194 = scmp.lt.s32.totalorder %s23, 3
      %p195 = pnand %p193, %p194
      %p196 = pneg %p195
      // Predicated region
      $region9: #{tpu_custom_call.1} parent=5 // pred_check
        _
      $region10: #{tpu_custom_call.1} parent=5 // pred_check_branch
        %198 = sbr.rel (%p195) target = $region12
      $region11: #{tpu_custom_call.1} parent=5 // pred_region
        %s199 = ssub.s32 %s23, 1
        // Predicated region
        $region13: #{tpu_custom_call.1} parent=11 // pred_check
          %p200 = pneg %p70
        $region14: #{tpu_custom_call.1} parent=11 // pred_check_branch
          %202 = sbr.rel (%p200) target = $region16
        $region15: #{tpu_custom_call.1} parent=11 // pred_region
          %s204 = ssub.s32 1536, 1536
          %205 = vsyncadd [#allocation6], %s204
          %s206 = sshll.u32 [#allocation5], 4
          %s207 = int_to_ptr.vmem [resolvable:$true] %s206
          %212 = dma.hbm_to_vmem [thread:$0]  %s1, 1536, %s207, [#allocation6], 384, 384, 24
        $region16: #{tpu_custom_call.1} parent=11 // pred_fallthru
          _
        // Predicated region
        $region17: #{tpu_custom_call.1} parent=11 // pred_check
          %p213 = pneg %p91
        $region18: #{tpu_custom_call.1} parent=11 // pred_check_branch
          %215 = sbr.rel (%p213) target = $region20
        $region19: #{tpu_custom_call.1} parent=11 // pred_region
          _
        $region20: #{tpu_custom_call.1} parent=11 // pred_fallthru
          _
        // Predicated region
        $region21: #{tpu_custom_call.1} parent=11 // pred_check
          %p216 = pneg %p112
        $region22: #{tpu_custom_call.1} parent=11 // pred_check_branch
          %218 = sbr.rel (%p216) target = $region24
        $region23: #{tpu_custom_call.1} parent=11 // pred_region
          %s220 = ssub.s32 512, 512
          %221 = vsyncadd [#allocation6], %s220
          %s222 = sshll.u32 [#allocation7], 4
          %s223 = int_to_ptr.vmem [resolvable:$true] %s222
          %228 = dma.hbm_to_vmem [thread:$0]  %s3, 512, %s223, [#allocation6], 128, 128, 8
        $region24: #{tpu_custom_call.1} parent=11 // pred_fallthru
          _
        // Predicated region
        $region25: #{tpu_custom_call.1} parent=11 // pred_check
          %p229 = pneg %p133
        $region26: #{tpu_custom_call.1} parent=11 // pred_check_branch
          %231 = sbr.rel (%p229) target = $region28
        $region27: #{tpu_custom_call.1} parent=11 // pred_region
          _
        $region28: #{tpu_custom_call.1} parent=11 // pred_fallthru
          _
      $region12: #{tpu_custom_call.1} parent=5 // pred_fallthru
        _
      %p232 = scmp.lt.s32.totalorder %s23, 2
      // Predicated region
      $region29: #{tpu_custom_call.1} parent=5 // pred_check
        %p233 = pneg %p232
      $region30: #{tpu_custom_call.1} parent=5 // pred_check_branch
        %235 = sbr.rel (%p233) target = $region32
      $region31: #{tpu_custom_call.1} parent=5 // pred_region
        // Predicated region
        $region33: #{tpu_custom_call.1} parent=31 // pred_check
          %p236 = pneg %p43
        $region34: #{tpu_custom_call.1} parent=31 // pred_check_branch
          %238 = sbr.rel (%p236) target = $region36
        $region35: #{tpu_custom_call.1} parent=31 // pred_region
          %s239 = sand.u32 %s33, 1
          %s240 = scalar_lea.sflag [#allocation3], %s239
          %s241 = sand.u32 %s33, 1
          %s242 = smul.addr %s241, 8
          %s243 = scalar_lea.vmem [#allocation2], %s242
          %s245 = ssub.s32 128, 128
          %246 = vsyncadd %s240, %s245
          %s247 = smul.addr %s23, 128
          %s248 = scalar_lea.hbm %s0, %s247
          %s250 = sshll.u32 %s243, 4
          %s251 = int_to_ptr.vmem [resolvable:$true] %s250
          %253 = dma.hbm_to_vmem [thread:$0]  %s248, 128, %s251, %s240
        $region36: #{tpu_custom_call.1} parent=31 // pred_fallthru
          _
      $region32: #{tpu_custom_call.1} parent=5 // pred_fallthru
        _
      %p254 = scmp.le.s32.totalorder 1, %s23
      %p255 = scmp.lt.s32.totalorder %s23, 3
      %p256 = pnand %p254, %p255
      %p257 = pneg %p256
      // Predicated region
      $region37: #{tpu_custom_call.1} parent=5 // pred_check
        _
      $region38: #{tpu_custom_call.1} parent=5 // pred_check_branch
        %259 = sbr.rel (%p256) target = $region40
      $region39: #{tpu_custom_call.1} parent=5 // pred_region
        %s260 = ssub.s32 %s23, 1
        %s261 = sand.u32 %s36, 1
        %s262 = scalar_lea.sflag [#allocation3], %s261
        %s263 = sand.u32 %s36, 1
        %s264 = smul.addr %s263, 8
        %s265 = scalar_lea.vmem [#allocation2], %s264
        // Predicated region
        $region41: #{tpu_custom_call.1} parent=39 // pred_check
          %p266 = pneg %p49
        $region42: #{tpu_custom_call.1} parent=39 // pred_check_branch
          %268 = sbr.rel (%p266) target = $region44
        $region43: #{tpu_custom_call.1} parent=39 // pred_region
          %269 = dma.done %s262, 128
        $region44: #{tpu_custom_call.1} parent=39 // pred_fallthru
          _
        // Predicated region
        $region45: #{tpu_custom_call.1} parent=39 // pred_check
          %p270 = pneg %p70
        $region46: #{tpu_custom_call.1} parent=39 // pred_check_branch
          %272 = sbr.rel (%p270) target = $region48
        $region47: #{tpu_custom_call.1} parent=39 // pred_region
          %273 = dma.done [#allocation6], 1536
        $region48: #{tpu_custom_call.1} parent=39 // pred_fallthru
          _
        // Predicated region
        $region49: #{tpu_custom_call.1} parent=39 // pred_check
          %p274 = pneg %p112
        $region50: #{tpu_custom_call.1} parent=39 // pred_check_branch
          %276 = sbr.rel (%p274) target = $region52
        $region51: #{tpu_custom_call.1} parent=39 // pred_region
          %277 = dma.done [#allocation6], 512
        $region52: #{tpu_custom_call.1} parent=39 // pred_fallthru
          _
        %s278 = sand.u32 %s36, 1
        %s279 = scalar_lea.sflag [#allocation3], %s278
        %s280 = sand.u32 %s36, 1
        %s281 = smul.addr %s280, 8
        %s282 = scalar_lea.vmem [#allocation2], %s281
        %p283 = pneg %p49
        %p284 = pneg %p46
        %p285 = pneg %p70
        %p286 = pneg %p67
        %p287 = pneg %p91
        %p288 = pneg %p88
        %p289 = pneg %p112
        %p290 = pneg %p109
        %p291 = pneg %p133
        %p292 = pneg %p130
        %p293 = pneg %p159
        %p294 = pneg %p156
        %s295 = sand.u32 %s146, 1
        %s296 = scalar_lea.sflag [#allocation4], %s295
        %s297 = sand.u32 %s146, 1
        %s298 = smul.addr %s297, 8
        %s299 = scalar_lea.vmem [#allocation8], %s298
        %p300 = pneg %p185
        %p301 = pneg %p182
        %s302 = sand.u32 %s172, 1
        %s303 = scalar_lea.sflag [#allocation10], %s302
        %s304 = sand.u32 %s172, 1
        %s305 = smul.addr %s304, 8
        %s306 = scalar_lea.vmem [#allocation9], %s305
        %v307 = vld [vmem:[%s265] sm:$0xff]
        %v308 = vld [vmem:[#allocation5] sm:$0xff]
        %v309 = vld [vmem:[#allocation5 + $0x8] sm:$0xff]
        %v310 = vld [vmem:[#allocation5 + $0x10] sm:$0xff]
        %v311 = vld [vmem:[#allocation5 + $0x18] sm:$0xff]
        %v312 = vld [vmem:[#allocation5 + $0x20] sm:$0xff]
        %v313 = vld [vmem:[#allocation5 + $0x28] sm:$0xff]
        %v314 = vld [vmem:[#allocation5 + $0x30] sm:$0xff]
        %v315 = vld [vmem:[#allocation5 + $0x38] sm:$0xff]
        %v316 = vld [vmem:[#allocation5 + $0x40] sm:$0xff]
        %v317 = vld [vmem:[#allocation5 + $0x48] sm:$0xff]
        %v318 = vld [vmem:[#allocation5 + $0x50] sm:$0xff]
        %v319 = vld [vmem:[#allocation5 + $0x58] sm:$0xff]
        %v320 = vld [vmem:[%s2] sm:$0x7]
        %v322 = vlaneseq
        %v323 = vshrl.u32 %v322, 7
        %v324 = vsub.s32 0, %v323
        %v325 = vrot.slane %v320, %v324
        %v326 = vlaneseq
        %v327 = vshrl.u32 %v326, 7
        %v328 = vsub.s32 1, %v327
        %v329 = vrot.slane %v320, %v328
        %v330 = vlaneseq
        %v331 = vshrl.u32 %v330, 7
        %v332 = vsub.s32 2, %v331
        %v333 = vrot.slane %v320, %v332
        %vm337 = vcmask 261120
        %v339 = vsel %vm337, %v307, 0
        %341 = vmatprep.subr.mxu0 %v309
        %342 = vmatpush1.msra.mxu0 %v308
        %343 = vmatprep.subr.mxu0 %v312
        %344 = vmatpush1.msra.mxu0 %v311
        %345 = vmatprep.subr.mxu0 %v315
        %346 = vmatpush1.msra.mxu0 %v314
        %347 = vmatprep.subr.mxu0 %v318
        %348 = vmatpush1.msra.mxu0 %v317
        %349 = vmatprep.subr.mxu0 0.0
        %350 = vmatpush1.msra.mxu0 0.0
        %351 = vmatprep.subr.mxu0 0.0
        %352 = vmatpush1.msra.mxu0 0.0
        %353 = vmatprep.subr.mxu0 0.0
        %354 = vmatpush1.msra.mxu0 0.0
        %355 = vmatprep.subr.mxu0 0.0
        %356 = vmatpush1.msra.mxu0 0.0
        %357 = vmatprep.subr.mxu0 0.0
        %358 = vmatpush1.msra.mxu0 0.0
        %359 = vmatprep.subr.mxu0 0.0
        %360 = vmatpush1.msra.mxu0 0.0
        %361 = vmatprep.subr.mxu0 0.0
        %362 = vmatpush1.msra.mxu0 0.0
        %363 = vmatprep.subr.mxu0 0.0
        %364 = vmatpush1.msra.mxu0 0.0
        %365 = vmatprep.subr.mxu0 0.0
        %366 = vmatpush1.msra.mxu0 0.0
        %367 = vmatprep.subr.mxu0 0.0
        %368 = vmatpush1.msra.mxu0 0.0
        %369 = vmatprep.subr.mxu0 0.0
        %370 = vmatpush1.msra.mxu0 0.0
        %371 = vmatprep.subr.mxu0 0.0
        %372 = vmatpush1.msra.mxu0 0.0
        %373 = vmatprep.subr.mxu0 0.0
        %374 = vmatpush1.msra.mxu0 0.0
        %375 = vmatprep.subr.mxu0 0.0
        %376 = vmatpush1.msra.mxu0 0.0
        %377 = vmatprep.subr.mxu0 0.0
        %378 = vmatpush1.msra.mxu0 0.0
        %379 = vmatprep.subr.mxu0 0.0
        %380 = vmatpush1.msra.mxu0 0.0
        %381 = vmatprep.subr.mxu0 0.0
        %382 = vmatpush1.msra.mxu0 0.0
        %383 = vmatprep.subr.mxu0 0.0
        %384 = vmatpush1.msra.mxu0 0.0
        %385 = vmatprep.subr.mxu0 0.0
        %386 = vmatpush1.msra.mxu0 0.0
        %387 = vmatprep.subr.mxu0 0.0
        %388 = vmatpush1.msra.mxu0 0.0
        %389 = vmatprep.subr.mxu0 0.0
        %390 = vmatpush1.msra.mxu0 0.0
        %391 = vmatprep.subr.mxu0 0.0
        %392 = vmatpush1.msra.mxu0 0.0
        %393 = vmatprep.subr.mxu0 0.0
        %394 = vmatpush1.msra.mxu0 0.0
        %395 = vmatprep.subr.mxu0 0.0
        %396 = vmatpush1.msra.mxu0 0.0
        %397 = vmatprep.subr.mxu0 0.0
        %398 = vmatpush1.msra.mxu0 0.0
        %399 = vmatprep.subr.mxu0 0.0
        %400 = vmatpush1.msra.mxu0 0.0
        %401 = vmatprep.subr.mxu0 0.0
        %402 = vmatpush1.msra.mxu0 0.0
        %403 = vmatprep.subr.mxu0 0.0
        %404 = vmatpush1.msra.mxu0 0.0
        %405 = vmatprep.mubr.f32.mxu0 0.0
        %406 = vmatmul.mubr.f32.gmra.mrb[0].mxu0 %v339
        %v407 = vpop.f32.mrb[0].mxu0
        %v408 = vadd.f32 %v325, %v407
        %v409 = vpop.f32.mrb[0].mxu0
        %v410 = vadd.f32 %v329, %v409
        %411 = vdwg.mxu0
        %412 = vmatprep.subr.mxu0 0.0
        %413 = vmatpush1.msra.mxu0 %v310
        %414 = vmatprep.subr.mxu0 0.0
        %415 = vmatpush1.msra.mxu0 %v313
        %416 = vmatprep.subr.mxu0 0.0
        %417 = vmatpush1.msra.mxu0 %v316
        %418 = vmatprep.subr.mxu0 0.0
        %419 = vmatpush1.msra.mxu0 %v319
        %420 = vmatprep.subr.mxu0 0.0
        %421 = vmatpush1.msra.mxu0 0.0
        %422 = vmatprep.subr.mxu0 0.0
        %423 = vmatpush1.msra.mxu0 0.0
        %424 = vmatprep.subr.mxu0 0.0
        %425 = vmatpush1.msra.mxu0 0.0
        %426 = vmatprep.subr.mxu0 0.0
        %427 = vmatpush1.msra.mxu0 0.0
        %428 = vmatprep.subr.mxu0 0.0
        %429 = vmatpush1.msra.mxu0 0.0
        %430 = vmatprep.subr.mxu0 0.0
        %431 = vmatpush1.msra.mxu0 0.0
        %432 = vmatprep.subr.mxu0 0.0
        %433 = vmatpush1.msra.mxu0 0.0
        %434 = vmatprep.subr.mxu0 0.0
        %435 = vmatpush1.msra.mxu0 0.0
        %436 = vmatprep.subr.mxu0 0.0
        %437 = vmatpush1.msra.mxu0 0.0
        %438 = vmatprep.subr.mxu0 0.0
        %439 = vmatpush1.msra.mxu0 0.0
        %440 = vmatprep.subr.mxu0 0.0
        %441 = vmatpush1.msra.mxu0 0.0
        %442 = vmatprep.subr.mxu0 0.0
        %443 = vmatpush1.msra.mxu0 0.0
        %444 = vmatprep.subr.mxu0 0.0
        %445 = vmatpush1.msra.mxu0 0.0
        %446 = vmatprep.subr.mxu0 0.0
        %447 = vmatpush1.msra.mxu0 0.0
        %448 = vmatprep.subr.mxu0 0.0
        %449 = vmatpush1.msra.mxu0 0.0
        %450 = vmatprep.subr.mxu0 0.0
        %451 = vmatpush1.msra.mxu0 0.0
        %452 = vmatprep.subr.mxu0 0.0
        %453 = vmatpush1.msra.mxu0 0.0
        %454 = vmatprep.subr.mxu0 0.0
        %455 = vmatpush1.msra.mxu0 0.0
        %456 = vmatprep.subr.mxu0 0.0
        %457 = vmatpush1.msra.mxu0 0.0
        %458 = vmatprep.subr.mxu0 0.0
        %459 = vmatpush1.msra.mxu0 0.0
        %460 = vmatprep.subr.mxu0 0.0
        %461 = vmatpush1.msra.mxu0 0.0
        %462 = vmatprep.subr.mxu0 0.0
        %463 = vmatpush1.msra.mxu0 0.0
        %464 = vmatprep.subr.mxu0 0.0
        %465 = vmatpush1.msra.mxu0 0.0
        %466 = vmatprep.subr.mxu0 0.0
        %467 = vmatpush1.msra.mxu0 0.0
        %468 = vmatprep.subr.mxu0 0.0
        %469 = vmatpush1.msra.mxu0 0.0
        %470 = vmatprep.subr.mxu0 0.0
        %471 = vmatpush1.msra.mxu0 0.0
        %472 = vmatprep.subr.mxu0 0.0
        %473 = vmatpush1.msra.mxu0 0.0
        %474 = vmatprep.subr.mxu0 0.0
        %475 = vmatpush1.msra.mxu0 0.0
        %476 = vmatprep.mubr.f32.mxu0 0.0
        %477 = vmatmul.mubr.f32.gmra.mrb[0].mxu0 %v339
        %v478 = vpop.f32.mrb[0].mxu0
        %v479 = vadd.f32 %v333, %v478
        %v480 = vpop.f32.mrb[0].mxu0
        %481 = vdwg.mxu0
        %vm482 = vcmask 64512
        %v484 = vsel %vm482, %v408, 0
        %v487 = vsel %vm482, %v410, 0
        %489 = vmatprep.subr.mxu0 0.0
        %490 = vmatpush1.xpose.msra.mxu0 %v487
        %491 = vmatprep.subr.mxu0 0.0
        %492 = vmatpush1.xpose.msra.mxu0 0.0
        %493 = vmatprep.subr.mxu0 0.0
        %494 = vmatpush1.xpose.msra.mxu0 0.0
        %495 = vmatprep.subr.mxu0 0.0
        %496 = vmatpush1.xpose.msra.mxu0 0.0
        %497 = vmatprep.subr.mxu0 0.0
        %498 = vmatpush1.xpose.msra.mxu0 0.0
        %499 = vmatprep.subr.mxu0 0.0
        %500 = vmatpush1.xpose.msra.mxu0 0.0
        %501 = vmatprep.subr.mxu0 0.0
        %502 = vmatpush1.xpose.msra.mxu0 0.0
        %503 = vmatprep.subr.mxu0 0.0
        %504 = vmatpush1.xpose.msra.mxu0 0.0
        %505 = vmatprep.subr.mxu0 0.0
        %506 = vmatpush1.xpose.msra.mxu0 0.0
        %507 = vmatprep.subr.mxu0 0.0
        %508 = vmatpush1.xpose.msra.mxu0 0.0
        %509 = vmatprep.subr.mxu0 0.0
        %510 = vmatpush1.xpose.msra.mxu0 0.0
        %511 = vmatprep.subr.mxu0 0.0
        %512 = vmatpush1.xpose.msra.mxu0 0.0
        %513 = vmatprep.subr.mxu0 0.0
        %514 = vmatpush1.xpose.msra.mxu0 0.0
        %515 = vmatprep.subr.mxu0 0.0
        %516 = vmatpush1.xpose.msra.mxu0 0.0
        %517 = vmatprep.subr.mxu0 0.0
        %518 = vmatpush1.xpose.msra.mxu0 0.0
        %519 = vmatprep.subr.mxu0 0.0
        %520 = vmatpush1.xpose.msra.mxu0 0.0
        %521 = vmatprep.subr.mxu0 0.0
        %522 = vmatpush1.xpose.msra.mxu0 0.0
        %523 = vmatprep.subr.mxu0 0.0
        %524 = vmatpush1.xpose.msra.mxu0 0.0
        %525 = vmatprep.subr.mxu0 0.0
        %526 = vmatpush1.xpose.msra.mxu0 0.0
        %527 = vmatprep.subr.mxu0 0.0
        %528 = vmatpush1.xpose.msra.mxu0 0.0
        %529 = vmatprep.subr.mxu0 0.0
        %530 = vmatpush1.xpose.msra.mxu0 0.0
        %531 = vmatprep.subr.mxu0 0.0
        %532 = vmatpush1.xpose.msra.mxu0 0.0
        %533 = vmatprep.subr.mxu0 0.0
        %534 = vmatpush1.xpose.msra.mxu0 0.0
        %535 = vmatprep.subr.mxu0 0.0
        %536 = vmatpush1.xpose.msra.mxu0 0.0
        %537 = vmatprep.subr.mxu0 0.0
        %538 = vmatpush1.xpose.msra.mxu0 0.0
        %539 = vmatprep.subr.mxu0 0.0
        %540 = vmatpush1.xpose.msra.mxu0 0.0
        %541 = vmatprep.subr.mxu0 0.0
        %542 = vmatpush1.xpose.msra.mxu0 0.0
        %543 = vmatprep.subr.mxu0 0.0
        %544 = vmatpush1.xpose.msra.mxu0 0.0
        %545 = vmatprep.subr.mxu0 0.0
        %546 = vmatpush1.xpose.msra.mxu0 0.0
        %547 = vmatprep.subr.mxu0 0.0
        %548 = vmatpush1.xpose.msra.mxu0 0.0
        %549 = vmatprep.subr.mxu0 0.0
        %550 = vmatpush1.xpose.msra.mxu0 0.0
        %551 = vmatprep.subr.mxu0 0.0
        %552 = vmatpush1.xpose.msra.mxu0 0.0
        %553 = vmatprep.mubr.f32.mxu0 0.0
        %554 = vmatmul.mubr.f32.gmra.mrb[0].mxu0 %v484
        %v555 = vpop.f32.mrb[0].mxu0
        %v556 = vadd.f32 0.0, %v555
        %v557 = vpop.f32.mrb[0].mxu0
        %558 = vdwg.mxu0
        %v559 = vsel %vm482, %v556, -inf
        %560 = vmax.xlane.f32.xlu0 %v559
        %v561 = vpop.xlane.xlu0 %560
        %v562 = vsub.f32 %v556, %v561
        %v563 = vmul.f32 %v562, 1.442695
        %v564 = vpow.pop %v563
        %v565 = vsel %vm482, %v564, 0.0
        %566 = vadd.xlane.f32.xlu0 %v565
        %v567 = vpop.xlane.xlu0 %566
        %v568 = vrcp.pop %v567
        %v569 = vmul.f32 %v567, %v568
        %v570 = vsub.f32 2.0, %v569
        %v571 = vmul.f32 %v568, %v570
        %v572 = vmul.f32 %v564, %v571
        %v574 = vsel %vm482, %v572, 0
        %576 = vmatprep.subr.mxu0 0.0
        %577 = vmatpush1.msra.mxu0 %v479
        %578 = vmatprep.subr.mxu0 0.0
        %579 = vmatpush1.msra.mxu0 0.0
        %580 = vmatprep.subr.mxu0 0.0
        %581 = vmatpush1.msra.mxu0 0.0
        %582 = vmatprep.subr.mxu0 0.0
        %583 = vmatpush1.msra.mxu0 0.0
        %584 = vmatprep.subr.mxu0 0.0
        %585 = vmatpush1.msra.mxu0 0.0
        %586 = vmatprep.subr.mxu0 0.0
        %587 = vmatpush1.msra.mxu0 0.0
        %588 = vmatprep.subr.mxu0 0.0
        %589 = vmatpush1.msra.mxu0 0.0
        %590 = vmatprep.subr.mxu0 0.0
        %591 = vmatpush1.msra.mxu0 0.0
        %592 = vmatprep.subr.mxu0 0.0
        %593 = vmatpush1.msra.mxu0 0.0
        %594 = vmatprep.subr.mxu0 0.0
        %595 = vmatpush1.msra.mxu0 0.0
        %596 = vmatprep.subr.mxu0 0.0
        %597 = vmatpush1.msra.mxu0 0.0
        %598 = vmatprep.subr.mxu0 0.0
        %599 = vmatpush1.msra.mxu0 0.0
        %600 = vmatprep.subr.mxu0 0.0
        %601 = vmatpush1.msra.mxu0 0.0
        %602 = vmatprep.subr.mxu0 0.0
        %603 = vmatpush1.msra.mxu0 0.0
        %604 = vmatprep.subr.mxu0 0.0
        %605 = vmatpush1.msra.mxu0 0.0
        %606 = vmatprep.subr.mxu0 0.0
        %607 = vmatpush1.msra.mxu0 0.0
        %608 = vmatprep.subr.mxu0 0.0
        %609 = vmatpush1.msra.mxu0 0.0
        %610 = vmatprep.subr.mxu0 0.0
        %611 = vmatpush1.msra.mxu0 0.0
        %612 = vmatprep.subr.mxu0 0.0
        %613 = vmatpush1.msra.mxu0 0.0
        %614 = vmatprep.subr.mxu0 0.0
        %615 = vmatpush1.msra.mxu0 0.0
        %616 = vmatprep.subr.mxu0 0.0
        %617 = vmatpush1.msra.mxu0 0.0
        %618 = vmatprep.subr.mxu0 0.0
        %619 = vmatpush1.msra.mxu0 0.0
        %620 = vmatprep.subr.mxu0 0.0
        %621 = vmatpush1.msra.mxu0 0.0
        %622 = vmatprep.subr.mxu0 0.0
        %623 = vmatpush1.msra.mxu0 0.0
        %624 = vmatprep.subr.mxu0 0.0
        %625 = vmatpush1.msra.mxu0 0.0
        %626 = vmatprep.subr.mxu0 0.0
        %627 = vmatpush1.msra.mxu0 0.0
        %628 = vmatprep.subr.mxu0 0.0
        %629 = vmatpush1.msra.mxu0 0.0
        %630 = vmatprep.subr.mxu0 0.0
        %631 = vmatpush1.msra.mxu0 0.0
        %632 = vmatprep.subr.mxu0 0.0
        %633 = vmatpush1.msra.mxu0 0.0
        %634 = vmatprep.subr.mxu0 0.0
        %635 = vmatpush1.msra.mxu0 0.0
        %636 = vmatprep.subr.mxu0 0.0
        %637 = vmatpush1.msra.mxu0 0.0
        %638 = vmatprep.subr.mxu0 0.0
        %639 = vmatpush1.msra.mxu0 0.0
        %640 = vmatprep.mubr.f32.mxu0 0.0
        %641 = vmatmul.mubr.f32.gmra.mrb[0].mxu0 %v574
        %v642 = vpop.f32.mrb[0].mxu0
        %v643 = vadd.f32 0.0, %v642
        %v644 = vpop.f32.mrb[0].mxu0
        %645 = vdwg.mxu0
        %646 = vrot.lane.b32.xlu0 %v408, 120
        %v647 = vpop.permute.xlu0 %646
        %648 = vrot.lane.b32.xlu0 %v410, 120
        %v649 = vpop.permute.xlu0 %648
        %v650 = vsel %vm482, %v647, 0
        %v652 = vsel %vm482, %v649, 0
        %654 = vmatprep.subr.mxu0 0.0
        %655 = vmatpush1.xpose.msra.mxu0 %v652
        %656 = vmatprep.subr.mxu0 0.0
        %657 = vmatpush1.xpose.msra.mxu0 0.0
        %658 = vmatprep.subr.mxu0 0.0
        %659 = vmatpush1.xpose.msra.mxu0 0.0
        %660 = vmatprep.subr.mxu0 0.0
        %661 = vmatpush1.xpose.msra.mxu0 0.0
        %662 = vmatprep.subr.mxu0 0.0
        %663 = vmatpush1.xpose.msra.mxu0 0.0
        %664 = vmatprep.subr.mxu0 0.0
        %665 = vmatpush1.xpose.msra.mxu0 0.0
        %666 = vmatprep.subr.mxu0 0.0
        %667 = vmatpush1.xpose.msra.mxu0 0.0
        %668 = vmatprep.subr.mxu0 0.0
        %669 = vmatpush1.xpose.msra.mxu0 0.0
        %670 = vmatprep.subr.mxu0 0.0
        %671 = vmatpush1.xpose.msra.mxu0 0.0
        %672 = vmatprep.subr.mxu0 0.0
        %673 = vmatpush1.xpose.msra.mxu0 0.0
        %674 = vmatprep.subr.mxu0 0.0
        %675 = vmatpush1.xpose.msra.mxu0 0.0
        %676 = vmatprep.subr.mxu0 0.0
        %677 = vmatpush1.xpose.msra.mxu0 0.0
        %678 = vmatprep.subr.mxu0 0.0
        %679 = vmatpush1.xpose.msra.mxu0 0.0
        %680 = vmatprep.subr.mxu0 0.0
        %681 = vmatpush1.xpose.msra.mxu0 0.0
        %682 = vmatprep.subr.mxu0 0.0
        %683 = vmatpush1.xpose.msra.mxu0 0.0
        %684 = vmatprep.subr.mxu0 0.0
        %685 = vmatpush1.xpose.msra.mxu0 0.0
        %686 = vmatprep.subr.mxu0 0.0
        %687 = vmatpush1.xpose.msra.mxu0 0.0
        %688 = vmatprep.subr.mxu0 0.0
        %689 = vmatpush1.xpose.msra.mxu0 0.0
        %690 = vmatprep.subr.mxu0 0.0
        %691 = vmatpush1.xpose.msra.mxu0 0.0
        %692 = vmatprep.subr.mxu0 0.0
        %693 = vmatpush1.xpose.msra.mxu0 0.0
        %694 = vmatprep.subr.mxu0 0.0
        %695 = vmatpush1.xpose.msra.mxu0 0.0
        %696 = vmatprep.subr.mxu0 0.0
        %697 = vmatpush1.xpose.msra.mxu0 0.0
        %698 = vmatprep.subr.mxu0 0.0
        %699 = vmatpush1.xpose.msra.mxu0 0.0
        %700 = vmatprep.subr.mxu0 0.0
        %701 = vmatpush1.xpose.msra.mxu0 0.0
        %702 = vmatprep.subr.mxu0 0.0
        %703 = vmatpush1.xpose.msra.mxu0 0.0
        %704 = vmatprep.subr.mxu0 0.0
        %705 = vmatpush1.xpose.msra.mxu0 0.0
        %706 = vmatprep.subr.mxu0 0.0
        %707 = vmatpush1.xpose.msra.mxu0 0.0
        %708 = vmatprep.subr.mxu0 0.0
        %709 = vmatpush1.xpose.msra.mxu0 0.0
        %710 = vmatprep.subr.mxu0 0.0
        %711 = vmatpush1.xpose.msra.mxu0 0.0
        %712 = vmatprep.subr.mxu0 0.0
        %713 = vmatpush1.xpose.msra.mxu0 0.0
        %714 = vmatprep.subr.mxu0 0.0
        %715 = vmatpush1.xpose.msra.mxu0 0.0
        %716 = vmatprep.subr.mxu0 0.0
        %717 = vmatpush1.xpose.msra.mxu0 0.0
        %718 = vmatprep.mubr.f32.mxu0 0.0
        %719 = vmatmul.mubr.f32.gmra.mrb[0].mxu0 %v650
        %v720 = vpop.f32.mrb[0].mxu0
        %v721 = vadd.f32 0.0, %v720
        %v722 = vpop.f32.mrb[0].mxu0
        %723 = vdwg.mxu0
        %v724 = vsel %vm482, %v721, -inf
        %725 = vmax.xlane.f32.xlu0 %v724
        %v726 = vpop.xlane.xlu0 %725
        %v727 = vsub.f32 %v721, %v726
        %v728 = vmul.f32 %v727, 1.442695
        %v729 = vpow.pop %v728
        %v730 = vsel %vm482, %v729, 0.0
        %731 = vadd.xlane.f32.xlu0 %v730
        %v732 = vpop.xlane.xlu0 %731
        %v733 = vrcp.pop %v732
        %v734 = vmul.f32 %v732, %v733
        %v735 = vsub.f32 2.0, %v734
        %v736 = vmul.f32 %v733, %v735
        %v737 = vmul.f32 %v729, %v736
        %739 = vrot.lane.b32.xlu0 %v479, 120
        %v740 = vpop.permute.xlu0 %739
        %v743 = vsel %vm482, %v737, 0
        %745 = vmatprep.subr.mxu0 0.0
        %746 = vmatpush1.msra.mxu0 %v740
        %747 = vmatprep.subr.mxu0 0.0
        %748 = vmatpush1.msra.mxu0 0.0
        %749 = vmatprep.subr.mxu0 0.0
        %750 = vmatpush1.msra.mxu0 0.0
        %751 = vmatprep.subr.mxu0 0.0
        %752 = vmatpush1.msra.mxu0 0.0
        %753 = vmatprep.subr.mxu0 0.0
        %754 = vmatpush1.msra.mxu0 0.0
        %755 = vmatprep.subr.mxu0 0.0
        %756 = vmatpush1.msra.mxu0 0.0
        %757 = vmatprep.subr.mxu0 0.0
        %758 = vmatpush1.msra.mxu0 0.0
        %759 = vmatprep.subr.mxu0 0.0
        %760 = vmatpush1.msra.mxu0 0.0
        %761 = vmatprep.subr.mxu0 0.0
        %762 = vmatpush1.msra.mxu0 0.0
        %763 = vmatprep.subr.mxu0 0.0
        %764 = vmatpush1.msra.mxu0 0.0
        %765 = vmatprep.subr.mxu0 0.0
        %766 = vmatpush1.msra.mxu0 0.0
        %767 = vmatprep.subr.mxu0 0.0
        %768 = vmatpush1.msra.mxu0 0.0
        %769 = vmatprep.subr.mxu0 0.0
        %770 = vmatpush1.msra.mxu0 0.0
        %771 = vmatprep.subr.mxu0 0.0
        %772 = vmatpush1.msra.mxu0 0.0
        %773 = vmatprep.subr.mxu0 0.0
        %774 = vmatpush1.msra.mxu0 0.0
        %775 = vmatprep.subr.mxu0 0.0
        %776 = vmatpush1.msra.mxu0 0.0
        %777 = vmatprep.subr.mxu0 0.0
        %778 = vmatpush1.msra.mxu0 0.0
        %779 = vmatprep.subr.mxu0 0.0
        %780 = vmatpush1.msra.mxu0 0.0
        %781 = vmatprep.subr.mxu0 0.0
        %782 = vmatpush1.msra.mxu0 0.0
        %783 = vmatprep.subr.mxu0 0.0
        %784 = vmatpush1.msra.mxu0 0.0
        %785 = vmatprep.subr.mxu0 0.0
        %786 = vmatpush1.msra.mxu0 0.0
        %787 = vmatprep.subr.mxu0 0.0
        %788 = vmatpush1.msra.mxu0 0.0
        %789 = vmatprep.subr.mxu0 0.0
        %790 = vmatpush1.msra.mxu0 0.0
        %791 = vmatprep.subr.mxu0 0.0
        %792 = vmatpush1.msra.mxu0 0.0
        %793 = vmatprep.subr.mxu0 0.0
        %794 = vmatpush1.msra.mxu0 0.0
        %795 = vmatprep.subr.mxu0 0.0
        %796 = vmatpush1.msra.mxu0 0.0
        %797 = vmatprep.subr.mxu0 0.0
        %798 = vmatpush1.msra.mxu0 0.0
        %799 = vmatprep.subr.mxu0 0.0
        %800 = vmatpush1.msra.mxu0 0.0
        %801 = vmatprep.subr.mxu0 0.0
        %802 = vmatpush1.msra.mxu0 0.0
        %803 = vmatprep.subr.mxu0 0.0
        %804 = vmatpush1.msra.mxu0 0.0
        %805 = vmatprep.subr.mxu0 0.0
        %806 = vmatpush1.msra.mxu0 0.0
        %807 = vmatprep.subr.mxu0 0.0
        %808 = vmatpush1.msra.mxu0 0.0
        %809 = vmatprep.mubr.f32.mxu0 0.0
        %810 = vmatmul.mubr.f32.gmra.mrb[0].mxu0 %v743
        %v811 = vpop.f32.mrb[0].mxu0
        %v812 = vadd.f32 0.0, %v811
        %v813 = vpop.f32.mrb[0].mxu0
        %814 = vdwg.mxu0
        %815 = vrot.lane.b32.xlu0 %v408, 112
        %v816 = vpop.permute.xlu0 %815
        %817 = vrot.lane.b32.xlu0 %v410, 112
        %v818 = vpop.permute.xlu0 %817
        %v819 = vsel %vm482, %v816, 0
        %v821 = vsel %vm482, %v818, 0
        %823 = vmatprep.subr.mxu0 0.0
        %824 = vmatpush1.xpose.msra.mxu0 %v821
        %825 = vmatprep.subr.mxu0 0.0
        %826 = vmatpush1.xpose.msra.mxu0 0.0
        %827 = vmatprep.subr.mxu0 0.0
        %828 = vmatpush1.xpose.msra.mxu0 0.0
        %829 = vmatprep.subr.mxu0 0.0
        %830 = vmatpush1.xpose.msra.mxu0 0.0
        %831 = vmatprep.subr.mxu0 0.0
        %832 = vmatpush1.xpose.msra.mxu0 0.0
        %833 = vmatprep.subr.mxu0 0.0
        %834 = vmatpush1.xpose.msra.mxu0 0.0
        %835 = vmatprep.subr.mxu0 0.0
        %836 = vmatpush1.xpose.msra.mxu0 0.0
        %837 = vmatprep.subr.mxu0 0.0
        %838 = vmatpush1.xpose.msra.mxu0 0.0
        %839 = vmatprep.subr.mxu0 0.0
        %840 = vmatpush1.xpose.msra.mxu0 0.0
        %841 = vmatprep.subr.mxu0 0.0
        %842 = vmatpush1.xpose.msra.mxu0 0.0
        %843 = vmatprep.subr.mxu0 0.0
        %844 = vmatpush1.xpose.msra.mxu0 0.0
        %845 = vmatprep.subr.mxu0 0.0
        %846 = vmatpush1.xpose.msra.mxu0 0.0
        %847 = vmatprep.subr.mxu0 0.0
        %848 = vmatpush1.xpose.msra.mxu0 0.0
        %849 = vmatprep.subr.mxu0 0.0
        %850 = vmatpush1.xpose.msra.mxu0 0.0
        %851 = vmatprep.subr.mxu0 0.0
        %852 = vmatpush1.xpose.msra.mxu0 0.0
        %853 = vmatprep.subr.mxu0 0.0
        %854 = vmatpush1.xpose.msra.mxu0 0.0
        %855 = vmatprep.subr.mxu0 0.0
        %856 = vmatpush1.xpose.msra.mxu0 0.0
        %857 = vmatprep.subr.mxu0 0.0
        %858 = vmatpush1.xpose.msra.mxu0 0.0
        %859 = vmatprep.subr.mxu0 0.0
        %860 = vmatpush1.xpose.msra.mxu0 0.0
        %861 = vmatprep.subr.mxu0 0.0
        %862 = vmatpush1.xpose.msra.mxu0 0.0
        %863 = vmatprep.subr.mxu0 0.0
        %864 = vmatpush1.xpose.msra.mxu0 0.0
        %865 = vmatprep.subr.mxu0 0.0
        %866 = vmatpush1.xpose.msra.mxu0 0.0
        %867 = vmatprep.subr.mxu0 0.0
        %868 = vmatpush1.xpose.msra.mxu0 0.0
        %869 = vmatprep.subr.mxu0 0.0
        %870 = vmatpush1.xpose.msra.mxu0 0.0
        %871 = vmatprep.subr.mxu0 0.0
        %872 = vmatpush1.xpose.msra.mxu0 0.0
        %873 = vmatprep.subr.mxu0 0.0
        %874 = vmatpush1.xpose.msra.mxu0 0.0
        %875 = vmatprep.subr.mxu0 0.0
        %876 = vmatpush1.xpose.msra.mxu0 0.0
        %877 = vmatprep.subr.mxu0 0.0
        %878 = vmatpush1.xpose.msra.mxu0 0.0
        %879 = vmatprep.subr.mxu0 0.0
        %880 = vmatpush1.xpose.msra.mxu0 0.0
        %881 = vmatprep.subr.mxu0 0.0
        %882 = vmatpush1.xpose.msra.mxu0 0.0
        %883 = vmatprep.subr.mxu0 0.0
        %884 = vmatpush1.xpose.msra.mxu0 0.0
        %885 = vmatprep.subr.mxu0 0.0
        %886 = vmatpush1.xpose.msra.mxu0 0.0
        %887 = vmatprep.mubr.f32.mxu0 0.0
        %888 = vmatmul.mubr.f32.gmra.mrb[0].mxu0 %v819
        %v889 = vpop.f32.mrb[0].mxu0
        %v890 = vadd.f32 0.0, %v889
        %v891 = vpop.f32.mrb[0].mxu0
        %892 = vdwg.mxu0
        %v893 = vsel %vm482, %v890, -inf
        %894 = vmax.xlane.f32.xlu0 %v893
        %v895 = vpop.xlane.xlu0 %894
        %v896 = vsub.f32 %v890, %v895
        %v897 = vmul.f32 %v896, 1.442695
        %v898 = vpow.pop %v897
        %v899 = vsel %vm482, %v898, 0.0
        %900 = vadd.xlane.f32.xlu0 %v899
        %v901 = vpop.xlane.xlu0 %900
        %v902 = vrcp.pop %v901
        %v903 = vmul.f32 %v901, %v902
        %v904 = vsub.f32 2.0, %v903
        %v905 = vmul.f32 %v902, %v904
        %v906 = vmul.f32 %v898, %v905
        %907 = vrot.lane.b32.xlu0 %v479, 112
        %v908 = vpop.permute.xlu0 %907
        %v911 = vsel %vm482, %v906, 0
        %913 = vmatprep.subr.mxu0 0.0
        %914 = vmatpush1.msra.mxu0 %v908
        %915 = vmatprep.subr.mxu0 0.0
        %916 = vmatpush1.msra.mxu0 0.0
        %917 = vmatprep.subr.mxu0 0.0
        %918 = vmatpush1.msra.mxu0 0.0
        %919 = vmatprep.subr.mxu0 0.0
        %920 = vmatpush1.msra.mxu0 0.0
        %921 = vmatprep.subr.mxu0 0.0
        %922 = vmatpush1.msra.mxu0 0.0
        %923 = vmatprep.subr.mxu0 0.0
        %924 = vmatpush1.msra.mxu0 0.0
        %925 = vmatprep.subr.mxu0 0.0
        %926 = vmatpush1.msra.mxu0 0.0
        %927 = vmatprep.subr.mxu0 0.0
        %928 = vmatpush1.msra.mxu0 0.0
        %929 = vmatprep.subr.mxu0 0.0
        %930 = vmatpush1.msra.mxu0 0.0
        %931 = vmatprep.subr.mxu0 0.0
        %932 = vmatpush1.msra.mxu0 0.0
        %933 = vmatprep.subr.mxu0 0.0
        %934 = vmatpush1.msra.mxu0 0.0
        %935 = vmatprep.subr.mxu0 0.0
        %936 = vmatpush1.msra.mxu0 0.0
        %937 = vmatprep.subr.mxu0 0.0
        %938 = vmatpush1.msra.mxu0 0.0
        %939 = vmatprep.subr.mxu0 0.0
        %940 = vmatpush1.msra.mxu0 0.0
        %941 = vmatprep.subr.mxu0 0.0
        %942 = vmatpush1.msra.mxu0 0.0
        %943 = vmatprep.subr.mxu0 0.0
        %944 = vmatpush1.msra.mxu0 0.0
        %945 = vmatprep.subr.mxu0 0.0
        %946 = vmatpush1.msra.mxu0 0.0
        %947 = vmatprep.subr.mxu0 0.0
        %948 = vmatpush1.msra.mxu0 0.0
        %949 = vmatprep.subr.mxu0 0.0
        %950 = vmatpush1.msra.mxu0 0.0
        %951 = vmatprep.subr.mxu0 0.0
        %952 = vmatpush1.msra.mxu0 0.0
        %953 = vmatprep.subr.mxu0 0.0
        %954 = vmatpush1.msra.mxu0 0.0
        %955 = vmatprep.subr.mxu0 0.0
        %956 = vmatpush1.msra.mxu0 0.0
        %957 = vmatprep.subr.mxu0 0.0
        %958 = vmatpush1.msra.mxu0 0.0
        %959 = vmatprep.subr.mxu0 0.0
        %960 = vmatpush1.msra.mxu0 0.0
        %961 = vmatprep.subr.mxu0 0.0
        %962 = vmatpush1.msra.mxu0 0.0
        %963 = vmatprep.subr.mxu0 0.0
        %964 = vmatpush1.msra.mxu0 0.0
        %965 = vmatprep.subr.mxu0 0.0
        %966 = vmatpush1.msra.mxu0 0.0
        %967 = vmatprep.subr.mxu0 0.0
        %968 = vmatpush1.msra.mxu0 0.0
        %969 = vmatprep.subr.mxu0 0.0
        %970 = vmatpush1.msra.mxu0 0.0
        %971 = vmatprep.subr.mxu0 0.0
        %972 = vmatpush1.msra.mxu0 0.0
        %973 = vmatprep.subr.mxu0 0.0
        %974 = vmatpush1.msra.mxu0 0.0
        %975 = vmatprep.subr.mxu0 0.0
        %976 = vmatpush1.msra.mxu0 0.0
        %977 = vmatprep.mubr.f32.mxu0 0.0
        %978 = vmatmul.mubr.f32.gmra.mrb[0].mxu0 %v911
        %v979 = vpop.f32.mrb[0].mxu0
        %v980 = vadd.f32 0.0, %v979
        %v981 = vpop.f32.mrb[0].mxu0
        %982 = vdwg.mxu0
        %983 = vrot.lane.b32.xlu0 %v408, 104
        %v984 = vpop.permute.xlu0 %983
        %985 = vrot.lane.b32.xlu0 %v410, 104
        %v986 = vpop.permute.xlu0 %985
        %v987 = vsel %vm482, %v984, 0
        %v989 = vsel %vm482, %v986, 0
        %991 = vmatprep.subr.mxu0 0.0
        %992 = vmatpush1.xpose.msra.mxu0 %v989
        %993 = vmatprep.subr.mxu0 0.0
        %994 = vmatpush1.xpose.msra.mxu0 0.0
        %995 = vmatprep.subr.mxu0 0.0
        %996 = vmatpush1.xpose.msra.mxu0 0.0
        %997 = vmatprep.subr.mxu0 0.0
        %998 = vmatpush1.xpose.msra.mxu0 0.0
        %999 = vmatprep.subr.mxu0 0.0
        %1000 = vmatpush1.xpose.msra.mxu0 0.0
        %1001 = vmatprep.subr.mxu0 0.0
        %1002 = vmatpush1.xpose.msra.mxu0 0.0
        %1003 = vmatprep.subr.mxu0 0.0
        %1004 = vmatpush1.xpose.msra.mxu0 0.0
        %1005 = vmatprep.subr.mxu0 0.0
        %1006 = vmatpush1.xpose.msra.mxu0 0.0
        %1007 = vmatprep.subr.mxu0 0.0
        %1008 = vmatpush1.xpose.msra.mxu0 0.0
        %1009 = vmatprep.subr.mxu0 0.0
        %1010 = vmatpush1.xpose.msra.mxu0 0.0
        %1011 = vmatprep.subr.mxu0 0.0
        %1012 = vmatpush1.xpose.msra.mxu0 0.0
        %1013 = vmatprep.subr.mxu0 0.0
        %1014 = vmatpush1.xpose.msra.mxu0 0.0
        %1015 = vmatprep.subr.mxu0 0.0
        %1016 = vmatpush1.xpose.msra.mxu0 0.0
        %1017 = vmatprep.subr.mxu0 0.0
        %1018 = vmatpush1.xpose.msra.mxu0 0.0
        %1019 = vmatprep.subr.mxu0 0.0
        %1020 = vmatpush1.xpose.msra.mxu0 0.0
        %1021 = vmatprep.subr.mxu0 0.0
        %1022 = vmatpush1.xpose.msra.mxu0 0.0
        %1023 = vmatprep.subr.mxu0 0.0
        %1024 = vmatpush1.xpose.msra.mxu0 0.0
        %1025 = vmatprep.subr.mxu0 0.0
        %1026 = vmatpush1.xpose.msra.mxu0 0.0
        %1027 = vmatprep.subr.mxu0 0.0
        %1028 = vmatpush1.xpose.msra.mxu0 0.0
        %1029 = vmatprep.subr.mxu0 0.0
        %1030 = vmatpush1.xpose.msra.mxu0 0.0
        %1031 = vmatprep.subr.mxu0 0.0
        %1032 = vmatpush1.xpose.msra.mxu0 0.0
        %1033 = vmatprep.subr.mxu0 0.0
        %1034 = vmatpush1.xpose.msra.mxu0 0.0
        %1035 = vmatprep.subr.mxu0 0.0
        %1036 = vmatpush1.xpose.msra.mxu0 0.0
        %1037 = vmatprep.subr.mxu0 0.0
        %1038 = vmatpush1.xpose.msra.mxu0 0.0
        %1039 = vmatprep.subr.mxu0 0.0
        %1040 = vmatpush1.xpose.msra.mxu0 0.0
        %1041 = vmatprep.subr.mxu0 0.0
        %1042 = vmatpush1.xpose.msra.mxu0 0.0
        %1043 = vmatprep.subr.mxu0 0.0
        %1044 = vmatpush1.xpose.msra.mxu0 0.0
        %1045 = vmatprep.subr.mxu0 0.0
        %1046 = vmatpush1.xpose.msra.mxu0 0.0
        %1047 = vmatprep.subr.mxu0 0.0
        %1048 = vmatpush1.xpose.msra.mxu0 0.0
        %1049 = vmatprep.subr.mxu0 0.0
        %1050 = vmatpush1.xpose.msra.mxu0 0.0
        %1051 = vmatprep.subr.mxu0 0.0
        %1052 = vmatpush1.xpose.msra.mxu0 0.0
        %1053 = vmatprep.subr.mxu0 0.0
        %1054 = vmatpush1.xpose.msra.mxu0 0.0
        %1055 = vmatprep.mubr.f32.mxu0 0.0
        %1056 = vmatmul.mubr.f32.gmra.mrb[0].mxu0 %v987
        %v1057 = vpop.f32.mrb[0].mxu0
        %v1058 = vadd.f32 0.0, %v1057
        %v1059 = vpop.f32.mrb[0].mxu0
        %1060 = vdwg.mxu0
        %v1061 = vsel %vm482, %v1058, -inf
        %1062 = vmax.xlane.f32.xlu0 %v1061
        %v1063 = vpop.xlane.xlu0 %1062
        %v1064 = vsub.f32 %v1058, %v1063
        %v1065 = vmul.f32 %v1064, 1.442695
        %v1066 = vpow.pop %v1065
        %v1067 = vsel %vm482, %v1066, 0.0
        %1068 = vadd.xlane.f32.xlu0 %v1067
        %v1069 = vpop.xlane.xlu0 %1068
        %v1070 = vrcp.pop %v1069
        %v1071 = vmul.f32 %v1069, %v1070
        %v1072 = vsub.f32 2.0, %v1071
        %v1073 = vmul.f32 %v1070, %v1072
        %v1074 = vmul.f32 %v1066, %v1073
        %1075 = vrot.lane.b32.xlu0 %v479, 104
        %v1076 = vpop.permute.xlu0 %1075
        %v1079 = vsel %vm482, %v1074, 0
        %1081 = vmatprep.subr.mxu0 0.0
        %1082 = vmatpush1.msra.mxu0 %v1076
        %1083 = vmatprep.subr.mxu0 0.0
        %1084 = vmatpush1.msra.mxu0 0.0
        %1085 = vmatprep.subr.mxu0 0.0
        %1086 = vmatpush1.msra.mxu0 0.0
        %1087 = vmatprep.subr.mxu0 0.0
        %1088 = vmatpush1.msra.mxu0 0.0
        %1089 = vmatprep.subr.mxu0 0.0
        %1090 = vmatpush1.msra.mxu0 0.0
        %1091 = vmatprep.subr.mxu0 0.0
        %1092 = vmatpush1.msra.mxu0 0.0
        %1093 = vmatprep.subr.mxu0 0.0
        %1094 = vmatpush1.msra.mxu0 0.0
        %1095 = vmatprep.subr.mxu0 0.0
        %1096 = vmatpush1.msra.mxu0 0.0
        %1097 = vmatprep.subr.mxu0 0.0
        %1098 = vmatpush1.msra.mxu0 0.0
        %1099 = vmatprep.subr.mxu0 0.0
        %1100 = vmatpush1.msra.mxu0 0.0
        %1101 = vmatprep.subr.mxu0 0.0
        %1102 = vmatpush1.msra.mxu0 0.0
        %1103 = vmatprep.subr.mxu0 0.0
        %1104 = vmatpush1.msra.mxu0 0.0
        %1105 = vmatprep.subr.mxu0 0.0
        %1106 = vmatpush1.msra.mxu0 0.0
        %1107 = vmatprep.subr.mxu0 0.0
        %1108 = vmatpush1.msra.mxu0 0.0
        %1109 = vmatprep.subr.mxu0 0.0
        %1110 = vmatpush1.msra.mxu0 0.0
        %1111 = vmatprep.subr.mxu0 0.0
        %1112 = vmatpush1.msra.mxu0 0.0
        %1113 = vmatprep.subr.mxu0 0.0
        %1114 = vmatpush1.msra.mxu0 0.0
        %1115 = vmatprep.subr.mxu0 0.0
        %1116 = vmatpush1.msra.mxu0 0.0
        %1117 = vmatprep.subr.mxu0 0.0
        %1118 = vmatpush1.msra.mxu0 0.0
        %1119 = vmatprep.subr.mxu0 0.0
        %1120 = vmatpush1.msra.mxu0 0.0
        %1121 = vmatprep.subr.mxu0 0.0
        %1122 = vmatpush1.msra.mxu0 0.0
        %1123 = vmatprep.subr.mxu0 0.0
        %1124 = vmatpush1.msra.mxu0 0.0
        %1125 = vmatprep.subr.mxu0 0.0
        %1126 = vmatpush1.msra.mxu0 0.0
        %1127 = vmatprep.subr.mxu0 0.0
        %1128 = vmatpush1.msra.mxu0 0.0
        %1129 = vmatprep.subr.mxu0 0.0
        %1130 = vmatpush1.msra.mxu0 0.0
        %1131 = vmatprep.subr.mxu0 0.0
        %1132 = vmatpush1.msra.mxu0 0.0
        %1133 = vmatprep.subr.mxu0 0.0
        %1134 = vmatpush1.msra.mxu0 0.0
        %1135 = vmatprep.subr.mxu0 0.0
        %1136 = vmatpush1.msra.mxu0 0.0
        %1137 = vmatprep.subr.mxu0 0.0
        %1138 = vmatpush1.msra.mxu0 0.0
        %1139 = vmatprep.subr.mxu0 0.0
        %1140 = vmatpush1.msra.mxu0 0.0
        %1141 = vmatprep.subr.mxu0 0.0
        %1142 = vmatpush1.msra.mxu0 0.0
        %1143 = vmatprep.subr.mxu0 0.0
        %1144 = vmatpush1.msra.mxu0 0.0
        %1145 = vmatprep.mubr.f32.mxu0 0.0
        %1146 = vmatmul.mubr.f32.gmra.mrb[0].mxu0 %v1079
        %v1147 = vpop.f32.mrb[0].mxu0
        %v1148 = vadd.f32 0.0, %v1147
        %v1149 = vpop.f32.mrb[0].mxu0
        %1150 = vdwg.mxu0
        %1151 = vrot.lane.b32.xlu0 %v737, 8
        %v1152 = vpop.permute.xlu0 %1151
        %1154 = vrot.lane.b32.xlu0 %v906, 16
        %v1155 = vpop.permute.xlu0 %1154
        %1157 = vrot.lane.b32.xlu0 %v1074, 24
        %v1158 = vpop.permute.xlu0 %1157
        %v1160 = vsel %vm482, %v572, %v1152
        %vm1161 = vcmask 130048
        %v1162 = vsel %vm1161, %v1160, %v1155
        %vm1163 = vcmask 195584
        %v1164 = vsel %vm1163, %v1162, %v1158
        %1165 = vst.msk [vmem:[%s306] sm:$0xff] %vm337, %v1164
        %1167 = vrot.lane.b32.xlu0 %v812, 8
        %v1168 = vpop.permute.xlu0 %1167
        %1171 = vrot.lane.b32.xlu0 %v980, 16
        %v1172 = vpop.permute.xlu0 %1171
        %1175 = vrot.lane.b32.xlu0 %v1148, 24
        %v1176 = vpop.permute.xlu0 %1175
        %v1178 = vsel %vm482, %v643, %v1168
        %v1179 = vsel %vm1161, %v1178, %v1172
        %v1180 = vsel %vm1163, %v1179, %v1176
        %v1181 = vld [vmem:[#allocation7] sm:$0xff]
        %v1182 = vld [vmem:[#allocation7 + $0x8] sm:$0xff]
        %v1183 = vld [vmem:[#allocation7 + $0x10] sm:$0xff]
        %v1184 = vld [vmem:[#allocation7 + $0x18] sm:$0xff]
        %v1185 = vld [vmem:[%s4] sm:$0x1]
        %v1187 = vlaneseq
        %v1188 = vshrl.u32 %v1187, 7
        %v1189 = vsub.s32 0, %v1188
        %v1190 = vrot.slane %v1185, %v1189
        %v1193 = vsel %vm337, %v1180, 0
        %1195 = vmatprep.subr.mxu0 0.0
        %1196 = vmatpush1.msra.mxu0 %v1181
        %1197 = vmatprep.subr.mxu0 0.0
        %1198 = vmatpush1.msra.mxu0 %v1182
        %1199 = vmatprep.subr.mxu0 0.0
        %1200 = vmatpush1.msra.mxu0 %v1183
        %1201 = vmatprep.subr.mxu0 0.0
        %1202 = vmatpush1.msra.mxu0 %v1184
        %1203 = vmatprep.subr.mxu0 0.0
        %1204 = vmatpush1.msra.mxu0 0.0
        %1205 = vmatprep.subr.mxu0 0.0
        %1206 = vmatpush1.msra.mxu0 0.0
        %1207 = vmatprep.subr.mxu0 0.0
        %1208 = vmatpush1.msra.mxu0 0.0
        %1209 = vmatprep.subr.mxu0 0.0
        %1210 = vmatpush1.msra.mxu0 0.0
        %1211 = vmatprep.subr.mxu0 0.0
        %1212 = vmatpush1.msra.mxu0 0.0
        %1213 = vmatprep.subr.mxu0 0.0
        %1214 = vmatpush1.msra.mxu0 0.0
        %1215 = vmatprep.subr.mxu0 0.0
        %1216 = vmatpush1.msra.mxu0 0.0
        %1217 = vmatprep.subr.mxu0 0.0
        %1218 = vmatpush1.msra.mxu0 0.0
        %1219 = vmatprep.subr.mxu0 0.0
        %1220 = vmatpush1.msra.mxu0 0.0
        %1221 = vmatprep.subr.mxu0 0.0
        %1222 = vmatpush1.msra.mxu0 0.0
        %1223 = vmatprep.subr.mxu0 0.0
        %1224 = vmatpush1.msra.mxu0 0.0
        %1225 = vmatprep.subr.mxu0 0.0
        %1226 = vmatpush1.msra.mxu0 0.0
        %1227 = vmatprep.subr.mxu0 0.0
        %1228 = vmatpush1.msra.mxu0 0.0
        %1229 = vmatprep.subr.mxu0 0.0
        %1230 = vmatpush1.msra.mxu0 0.0
        %1231 = vmatprep.subr.mxu0 0.0
        %1232 = vmatpush1.msra.mxu0 0.0
        %1233 = vmatprep.subr.mxu0 0.0
        %1234 = vmatpush1.msra.mxu0 0.0
        %1235 = vmatprep.subr.mxu0 0.0
        %1236 = vmatpush1.msra.mxu0 0.0
        %1237 = vmatprep.subr.mxu0 0.0
        %1238 = vmatpush1.msra.mxu0 0.0
        %1239 = vmatprep.subr.mxu0 0.0
        %1240 = vmatpush1.msra.mxu0 0.0
        %1241 = vmatprep.subr.mxu0 0.0
        %1242 = vmatpush1.msra.mxu0 0.0
        %1243 = vmatprep.subr.mxu0 0.0
        %1244 = vmatpush1.msra.mxu0 0.0
        %1245 = vmatprep.subr.mxu0 0.0
        %1246 = vmatpush1.msra.mxu0 0.0
        %1247 = vmatprep.subr.mxu0 0.0
        %1248 = vmatpush1.msra.mxu0 0.0
        %1249 = vmatprep.subr.mxu0 0.0
        %1250 = vmatpush1.msra.mxu0 0.0
        %1251 = vmatprep.subr.mxu0 0.0
        %1252 = vmatpush1.msra.mxu0 0.0
        %1253 = vmatprep.subr.mxu0 0.0
        %1254 = vmatpush1.msra.mxu0 0.0
        %1255 = vmatprep.subr.mxu0 0.0
        %1256 = vmatpush1.msra.mxu0 0.0
        %1257 = vmatprep.subr.mxu0 0.0
        %1258 = vmatpush1.msra.mxu0 0.0
        %1259 = vmatprep.mubr.f32.mxu0 0.0
        %1260 = vmatmul.mubr.f32.gmra.mrb[0].mxu0 %v1193
        %v1261 = vpop.f32.mrb[0].mxu0
        %v1262 = vadd.f32 %v1190, %v1261
        %v1263 = vpop.f32.mrb[0].mxu0
        %1264 = vdwg.mxu0
        %1265 = vst.msk [vmem:[%s299] sm:$0xff] %vm337, %v1262
        %s1266 = sand.u32 %s146, 1
        %s1267 = scalar_lea.sflag [#allocation4], %s1266
        %s1268 = sand.u32 %s146, 1
        %s1269 = smul.addr %s1268, 8
        %s1270 = scalar_lea.vmem [#allocation8], %s1269
        %s1271 = sand.u32 %s172, 1
        %s1272 = scalar_lea.sflag [#allocation10], %s1271
        %s1273 = sand.u32 %s172, 1
        %s1274 = smul.addr %s1273, 8
        %s1275 = scalar_lea.vmem [#allocation9], %s1274
        // Predicated region
        $region53: #{tpu_custom_call.1} parent=39 // pred_check
          %p1276 = pneg %p156
        $region54: #{tpu_custom_call.1} parent=39 // pred_check_branch
          %1278 = sbr.rel (%p1276) target = $region56
        $region55: #{tpu_custom_call.1} parent=39 // pred_region
          %s1280 = ssub.s32 128, 128
          %1281 = vsyncadd %s1267, %s1280
          %s1282 = smul.addr %s28, 128
          %s1283 = scalar_lea.hbm %s5, %s1282
          %s1285 = sshll.u32 %s1270, 4
          %s1286 = int_to_ptr.vmem [resolvable:$true] %s1285
          %1288 = dma.vmem_to_hbm [thread:$0]  %s1286, 128, %s1283, %s1267
        $region56: #{tpu_custom_call.1} parent=39 // pred_fallthru
          _
        // Predicated region
        $region57: #{tpu_custom_call.1} parent=39 // pred_check
          %p1289 = pneg %p182
        $region58: #{tpu_custom_call.1} parent=39 // pred_check_branch
          %1291 = sbr.rel (%p1289) target = $region60
        $region59: #{tpu_custom_call.1} parent=39 // pred_region
          %s1293 = ssub.s32 128, 128
          %1294 = vsyncadd %s1272, %s1293
          %s1295 = smul.addr %s28, 128
          %s1296 = scalar_lea.hbm %s6, %s1295
          %s1298 = sshll.u32 %s1275, 4
          %s1299 = int_to_ptr.vmem [resolvable:$true] %s1298
          %1301 = dma.vmem_to_hbm [thread:$0]  %s1299, 128, %s1296, %s1272
        $region60: #{tpu_custom_call.1} parent=39 // pred_fallthru
          _
      $region40: #{tpu_custom_call.1} parent=5 // pred_fallthru
        _
      %p1302 = scmp.le.s32.totalorder 2, %s23
      // Predicated region
      $region61: #{tpu_custom_call.1} parent=5 // pred_check
        %p1303 = pneg %p1302
      $region62: #{tpu_custom_call.1} parent=5 // pred_check_branch
        %1305 = sbr.rel (%p1303) target = $region64
      $region63: #{tpu_custom_call.1} parent=5 // pred_region
        %s1306 = ssub.s32 %s23, 2
        // Predicated region
        $region65: #{tpu_custom_call.1} parent=63 // pred_check
          %p1307 = pneg %p162
        $region66: #{tpu_custom_call.1} parent=63 // pred_check_branch
          %1309 = sbr.rel (%p1307) target = $region68
        $region67: #{tpu_custom_call.1} parent=63 // pred_region
          %s1310 = sand.u32 %s147, 1
          %s1311 = scalar_lea.sflag [#allocation4], %s1310
          %s1312 = sand.u32 %s147, 1
          %s1313 = smul.addr %s1312, 8
          %s1314 = scalar_lea.vmem [#allocation8], %s1313
          %1315 = dma.done %s1311, 128
        $region68: #{tpu_custom_call.1} parent=63 // pred_fallthru
          _
        // Predicated region
        $region69: #{tpu_custom_call.1} parent=63 // pred_check
          %p1316 = pneg %p188
        $region70: #{tpu_custom_call.1} parent=63 // pred_check_branch
          %1318 = sbr.rel (%p1316) target = $region72
        $region71: #{tpu_custom_call.1} parent=63 // pred_region
          %s1319 = sand.u32 %s173, 1
          %s1320 = scalar_lea.sflag [#allocation10], %s1319
          %s1321 = sand.u32 %s173, 1
          %s1322 = smul.addr %s1321, 8
          %s1323 = scalar_lea.vmem [#allocation9], %s1322
          %1324 = dma.done %s1320, 128
        $region72: #{tpu_custom_call.1} parent=63 // pred_fallthru
          _
      $region64: #{tpu_custom_call.1} parent=5 // pred_fallthru
        _
    $region6: #{tpu_custom_call.1} parent=1 // loop_footer
      %s27 = sadd.s32 1, %s23
    $region7: #{tpu_custom_call.1} parent=1 // loop_footer_branch
      %22 = sbr.rel target = $region3
    $region8: #{tpu_custom_call.1} parent=1 // loop_exit
      _
    %1325 = vsyncpa [#allocation3], 1
    %s1326 = scalar_lea.sflag [#allocation3], 1
    %1327 = vsyncpa %s1326, 1
    %1328 = vsyncpa [#allocation6], 1
    %1329 = vsyncpa [#allocation4], 1
    %s1330 = scalar_lea.sflag [#allocation4], 1
    %1331 = vsyncpa %s1330, 1
    %1332 = vsyncpa [#allocation10], 1
    %s1333 = scalar_lea.sflag [#allocation10], 1
    %1334 = vsyncpa %s1333, 1

</llo_original>
